<compile_context>
chip_gen: v5e
topology: v5e:2x2
jax: 0.10.0
libtpu: 0.0.40
codegen_flags: <defaults>
</compile_context>

<pallas_src>
import numpy as np
import jax
import jax.numpy as jnp
from jax.experimental import pallas as pl
from jax.experimental.pallas import tpu as pltpu

HIGHEST = jax.lax.Precision.HIGHEST


# ----------------------------------------------------------------------------
# GRU cell math on pre-projected inputs.  gi = x@W_ih + b_ih (precomputed),
# gh = h@W_hh + b_hh.  Gate order along 3H is [r, z, n].
# ----------------------------------------------------------------------------
def _gru_cell(gi, gh, h, m, H):
    r = jax.nn.sigmoid(gi[:, 0:H] + gh[:, 0:H])
    z = jax.nn.sigmoid(gi[:, H:2 * H] + gh[:, H:2 * H])
    n = jnp.tanh(gi[:, 2 * H:3 * H] + r * gh[:, 2 * H:3 * H])
    cand = (1.0 - z) * n + z * h
    h_new = m * cand + (1.0 - m) * h          # freeze hidden past sequence end
    return h_new, m * cand                    # padded positions -> 0 (pad_packed)


# ----------------------------------------------------------------------------
# Pallas kernel: both GRU directions over one time chunk.  grid = (n_chunks,),
# recurrence carried across chunks in VMEM scratch.  Backward direction is fed
# the time-reversed chunk via its index_map and reversed again inside the block.
# ----------------------------------------------------------------------------
def gru_bidir_kernel(gi_f_ref, gi_b_ref, mf_ref, mb_ref,
                     whh_f_ref, whh_b_ref, bhh_f_ref, bhh_b_ref,
                     out_f_ref, out_b_ref, hf_out_ref, hb_out_ref,
                     hf_scr, hb_scr):
    c = pl.program_id(0)
    nc = pl.num_programs(0)
    Tc = gi_f_ref.shape[0]
    H = hf_scr.shape[-1]

    @pl.when(c == 0)
    def _init():
        hf_scr[...] = jnp.zeros_like(hf_scr)
        hb_scr[...] = jnp.zeros_like(hb_scr)

    w_f = whh_f_ref[...]      # (H, 3H) — loaded once per chunk, hoisted
    w_b = whh_b_ref[...]
    b_f = bhh_f_ref[...]      # (1, 3H)
    b_b = bhh_b_ref[...]

    def step(j, carry):
        h_f, h_b = carry

        # ---- forward stream: local time j of forward chunk c ----
        gi = gi_f_ref[j]                      # (B, 3H) precomputed x@W_ih + b_ih
        m = mf_ref[j]                         # (B, 1)
        gh = jnp.dot(h_f, w_f, preferred_element_type=jnp.float32) + b_f
        h_f, o_f = _gru_cell(gi, gh, h_f, m, H)
        out_f_ref[j] = o_f

        # ---- backward stream: reversed chunk (via index_map), reversed block ----
        jr = Tc - 1 - j
        gi = gi_b_ref[jr]
        m = mb_ref[jr]
        gh = jnp.dot(h_b, w_b, preferred_element_type=jnp.float32) + b_b
        h_b, o_b = _gru_cell(gi, gh, h_b, m, H)
        out_b_ref[jr] = o_b                   # lands at the original time index

        return h_f, h_b

    h_f, h_b = jax.lax.fori_loop(0, Tc, step, (hf_scr[...], hb_scr[...]),
                                 unroll=True)
    hf_scr[...] = h_f
    hb_scr[...] = h_b

    @pl.when(c == nc - 1)                     # final hidden stored exactly once
    def _final():
        hf_out_ref[...] = h_f
        hb_out_ref[...] = h_b


def bi_gru_layer_pallas(gi_f, gi_b, mask, w_hh_f, w_hh_b, b_hh_f, b_hh_b, Tc):
    """gi_*: (T_pad, B_pad, 3H) f32 precomputed input projections (bias folded).
    mask: (T_pad, B_pad, 1) f32.  Returns out_f, out_b (T_pad,B_pad,H) and the
    final hidden states h_f, h_b (B_pad, H)."""
    T_pad, B_pad, H3 = gi_f.shape
    H = H3 // 3
    nc = T_pad // Tc

    grid_spec = pltpu.PrefetchScalarGridSpec(
        num_scalar_prefetch=0,
        grid=(nc,),
        in_specs=[
            pl.BlockSpec((Tc, B_pad, H3), lambda c: (c, 0, 0)),            # gi_f
            pl.BlockSpec((Tc, B_pad, H3), lambda c: (nc - 1 - c, 0, 0)),   # gi_b (reversed chunks)
            pl.BlockSpec((Tc, B_pad, 1), lambda c: (c, 0, 0)),             # mask (fwd order)
            pl.BlockSpec((Tc, B_pad, 1), lambda c: (nc - 1 - c, 0, 0)),    # mask (bwd order)
            pl.BlockSpec((H, H3), lambda c: (0, 0)),                       # W_hh fwd
            pl.BlockSpec((H, H3), lambda c: (0, 0)),                       # W_hh bwd
            pl.BlockSpec((1, H3), lambda c: (0, 0)),                       # b_hh fwd
            pl.BlockSpec((1, H3), lambda c: (0, 0)),                       # b_hh bwd
        ],
        out_specs=[
            pl.BlockSpec((Tc, B_pad, H), lambda c: (c, 0, 0)),             # out_f
            pl.BlockSpec((Tc, B_pad, H), lambda c: (nc - 1 - c, 0, 0)),    # out_b
            pl.BlockSpec((B_pad, H), lambda c: (0, 0)),                    # h_f (resident)
            pl.BlockSpec((B_pad, H), lambda c: (0, 0)),                    # h_b (resident)
        ],
        scratch_shapes=[pltpu.VMEM((B_pad, H), jnp.float32),
                        pltpu.VMEM((B_pad, H), jnp.float32)],
    )
    return pl.pallas_call(
        gru_bidir_kernel,
        out_shape=(jax.ShapeDtypeStruct((T_pad, B_pad, H), jnp.float32),
                   jax.ShapeDtypeStruct((T_pad, B_pad, H), jnp.float32),
                   jax.ShapeDtypeStruct((B_pad, H), jnp.float32),
                   jax.ShapeDtypeStruct((B_pad, H), jnp.float32)),
        grid_spec=grid_spec,
        compiler_params=pltpu.CompilerParams(dimension_semantics=("arbitrary",)),
    )(gi_f, gi_b, mask, mask, w_hh_f, w_hh_b, b_hh_f, b_hh_b)


# ----------------------------------------------------------------------------
# Optimized encoder forward (Pallas path).
# ----------------------------------------------------------------------------
def dynamic_encoder_forward_pallas(input_seqs, input_lens, params, n_layers,
                                   time_block=16):
    """input_seqs: (B, T) int32; input_lens: numpy int array of length B."""
    B = int(input_seqs.shape[0])
    embedded = jnp.take(params["embedding"], input_seqs, axis=0)     # (B, T, E)

    sort_idx = np.argsort(-input_lens)
    unsort_idx = np.argsort(sort_idx)
    lens_sorted = input_lens[sort_idx]
    embedded = embedded[jnp.asarray(sort_idx)]

    Tmax = int(lens_sorted.max())                      # pack/pad_packed length
    x = jnp.transpose(embedded[:, :Tmax, :], (1, 0, 2))              # (T, B, E)

    # Pad once: time to a multiple of the chunk size, batch to 8 sublanes.
    Tc = max(1, min(time_block, Tmax))
    nc = -(-Tmax // Tc)
    T_pad = nc * Tc
    B_pad = max(8, ((B + 7) // 8) * 8)
    x = jnp.pad(x, ((0, T_pad - Tmax), (0, B_pad - B), (0, 0)))

    lens_pad = np.zeros((B_pad,), np.int32)
    lens_pad[:B] = lens_sorted
    mask = (jnp.arange(T_pad)[:, None] < jnp.asarray(lens_pad)[None, :]
            ).astype(jnp.float32)[:, :, None]                        # (T_pad, B_pad, 1)

    hiddens = []
    prev_f = prev_b = None
    for layer in range(n_layers):
        p = params["gru"][layer]
        H = p["w_hh_f"].shape[0]
        if layer == 0:
            # One big MXU-friendly matmul per direction (bias folded in).
            gi_f = jnp.einsum("tbe,ek->tbk", x, p["w_ih_f"],
                              precision=HIGHEST) + p["b_ih_f"]
            gi_b = jnp.einsum("tbe,ek->tbk", x, p["w_ih_b"],
                              precision=HIGHEST) + p["b_ih_b"]
        else:
            # Avoid concatenating out_f/out_b: use split halves of W_ih.
            gi_f = (jnp.einsum("tbh,hk->tbk", prev_f, p["w_ih_f"][:H], precision=HIGHEST)
                    + jnp.einsum("tbh,hk->tbk", prev_b, p["w_ih_f"][H:], precision=HIGHEST)
                    + p["b_ih_f"])
            gi_b = (jnp.einsum("tbh,hk->tbk", prev_f, p["w_ih_b"][:H], precision=HIGHEST)
                    + jnp.einsum("tbh,hk->tbk", prev_b, p["w_ih_b"][H:], precision=HIGHEST)
                    + p["b_ih_b"])

        out_f, out_b, h_f, h_b = bi_gru_layer_pallas(
            gi_f, gi_b, mask,
            p["w_hh_f"], p["w_hh_b"], p["b_hh_f"], p["b_hh_b"], Tc)
        prev_f, prev_b = out_f, out_b
        hiddens += [h_f[:B], h_b[:B]]

    outputs = (prev_f + prev_b)[:Tmax, :B]                           # (Tmax, B, H)
    outputs = jnp.transpose(outputs, (1, 0, 2))                      # (B, Tmax, H)
    hidden = jnp.stack(hiddens, axis=0)                              # (2*n_layers, B, H)

    outputs = outputs[jnp.asarray(unsort_idx)]
    hidden = hidden[jnp.asarray(unsort_idx)]   # reproduces original dim-0 indexing quirk
    return outputs, hidden


# ----------------------------------------------------------------------------
# Pure-JAX reference (structure mirrors the PyTorch module: gather-based
# per-sequence reversal + concat between layers).
# ----------------------------------------------------------------------------
def _gru_dir_ref(x, mask, w_ih, w_hh, b_ih, b_hh):
    H = w_hh.shape[0]
    B = x.shape[1]

    def step(h, xm):
        x_t, m_t = xm
        gi = jnp.dot(x_t, w_ih, precision=HIGHEST) + b_ih
        gh = jnp.dot(h, w_hh, precision=HIGHEST) + b_hh
        r = jax.nn.sigmoid(gi[:, :H] + gh[:, :H])
        z = jax.nn.sigmoid(gi[:, H:2 * H] + gh[:, H:2 * H])
        n = jnp.tanh(gi[:, 2 * H:] + r * gh[:, 2 * H:])
        cand = (1.0 - z) * n + z * h
        h_new = m_t * cand + (1.0 - m_t) * h
        return h_new, m_t * cand

    h0 = jnp.zeros((B, H), jnp.float32)
    hN, outs = jax.lax.scan(step, h0, (x, mask))
    return outs, hN


def _reverse_valid(x_tbf, lens_j):
    T = x_tbf.shape[0]
    t_idx = jnp.arange(T)[:, None]
    lens_b = lens_j[None, :]
    rev = jnp.where(t_idx < lens_b, lens_b - 1 - t_idx, t_idx)
    rev = jnp.broadcast_to(rev[:, :, None], x_tbf.shape)
    return jnp.take_along_axis(x_tbf, rev, axis=0)


def dynamic_encoder_forward_ref(input_seqs, input_lens, params, n_layers):
    embedded = jnp.take(params["embedding"], input_seqs, axis=0)
    sort_idx = np.argsort(-input_lens)
    unsort_idx = np.argsort(sort_idx)
    lens_sorted = input_lens[sort_idx]
    embedded = embedded[jnp.asarray(sort_idx)]

    Tmax = int(lens_sorted.max())
    x = jnp.transpose(embedded[:, :Tmax, :], (1, 0, 2))
    lens_j = jnp.asarray(lens_sorted, jnp.int32)
    mask = (jnp.arange(Tmax)[:, None] < lens_j[None, :]
            ).astype(jnp.float32)[:, :, None]

    hiddens = []
    layer_in = x
    out_f = out_b = None
    for layer in range(n_layers):
        p = params["gru"][layer]
        out_f, h_f = _gru_dir_ref(layer_in, mask,
                                  p["w_ih_f"], p["w_hh_f"], p["b_ih_f"], p["b_hh_f"])
        x_rev = _reverse_valid(layer_in, lens_j)
        out_b_rev, h_b = _gru_dir_ref(x_rev, mask,
                                      p["w_ih_b"], p["w_hh_b"], p["b_ih_b"], p["b_hh_b"])
        out_b = _reverse_valid(out_b_rev, lens_j)
        hiddens += [h_f, h_b]
        layer_in = jnp.concatenate([out_f, out_b], axis=-1)

    outputs = jnp.transpose(out_f + out_b, (1, 0, 2))
    hidden = jnp.stack(hiddens, axis=0)
    return outputs[jnp.asarray(unsort_idx)], hidden[jnp.asarray(unsort_idx)]


# ----------------------------------------------------------------------------
# Parameters (fused gate layout: W_ih (In, 3H), W_hh (H, 3H), biases (1, 3H)).
# ----------------------------------------------------------------------------
def init_params(key, vocab, embed_size, hidden_size, n_layers):
    k_emb, key = jax.random.split(key)
    params = {"embedding": jax.random.normal(k_emb, (vocab, embed_size),
                                             jnp.float32) * 0.1,
              "gru": []}
    bound = 1.0 / np.sqrt(hidden_size)
    for layer in range(n_layers):
        in_size = embed_size if layer == 0 else 2 * hidden_size
        p = {}
        for d in ("f", "b"):
            key, k1, k2, k3, k4 = jax.random.split(key, 5)
            p[f"w_ih_{d}"] = jax.random.uniform(k1, (in_size, 3 * hidden_size),
                                                jnp.float32, -bound, bound)
            p[f"w_hh_{d}"] = jax.random.uniform(k2, (hidden_size, 3 * hidden_size),
                                                jnp.float32, -bound, bound)
            p[f"b_ih_{d}"] = jax.random.uniform(k3, (1, 3 * hidden_size),
                                                jnp.float32, -bound, bound)
            p[f"b_hh_{d}"] = jax.random.uniform(k4, (1, 3 * hidden_size),
                                                jnp.float32, -bound, bound)
        params["gru"].append(p)
    return params


if __name__ == "__main__":
    # Small shapes consistent with the module.
    vocab = 20        # input_size
    embed_size = 32
    hidden_size = 32
    n_layers = 2
    B, T = 2, 10

    key = jax.random.PRNGKey(0)
    k_params, k_tokens = jax.random.split(key)
    params = init_params(k_params, vocab, embed_size, hidden_size, n_layers)

    input_seqs = jax.random.randint(k_tokens, (B, T), 0, vocab, dtype=jnp.int32)
    input_lens = np.array([5, 8], dtype=np.int64)   # numpy, as in the PyTorch module

    outputs, hidden = dynamic_encoder_forward_pallas(
        input_seqs, input_lens, params, n_layers)
    outputs = jax.block_until_ready(outputs)
    hidden = jax.block_until_ready(hidden)

    # Pure-JAX reference check.
    out_ref, hid_ref = dynamic_encoder_forward_ref(
        input_seqs, input_lens, params, n_layers)

    assert outputs.shape == (B, int(input_lens.max()), hidden_size), outputs.shape
    assert hidden.shape == (B, B, hidden_size), hidden.shape  # quirky hidden[unsort_idx]
    np.testing.assert_allclose(np.asarray(outputs), np.asarray(out_ref),
                               rtol=1e-3, atol=1e-4)
    np.testing.assert_allclose(np.asarray(hidden), np.asarray(hid_ref),
                               rtol=1e-3, atol=1e-4)
    print("KERNEL_OK")
</pallas_src>

<mosaic_0001>
module attributes {stable_mosaic.version = 11 : i64} {
  func.func @gru_bidir_kernel(%arg0: i32, %arg1: memref<8x8x96xf32, #tpu.memory_space<vmem>>, %arg2: memref<8x8x96xf32, #tpu.memory_space<vmem>>, %arg3: memref<8x8x1xf32, #tpu.memory_space<vmem>>, %arg4: memref<8x8x1xf32, #tpu.memory_space<vmem>>, %arg5: memref<32x96xf32, #tpu.memory_space<vmem>>, %arg6: memref<32x96xf32, #tpu.memory_space<vmem>>, %arg7: memref<1x96xf32, #tpu.memory_space<vmem>>, %arg8: memref<1x96xf32, #tpu.memory_space<vmem>>, %arg9: memref<8x8x32xf32, #tpu.memory_space<vmem>>, %arg10: memref<8x8x32xf32, #tpu.memory_space<vmem>>, %arg11: memref<8x32xf32, #tpu.memory_space<vmem>>, %arg12: memref<8x32xf32, #tpu.memory_space<vmem>>, %arg13: memref<8x32xf32, #tpu.memory_space<vmem>>, %arg14: memref<8x32xf32, #tpu.memory_space<vmem>>) attributes {dimension_semantics = [#tpu.dimension_semantics<arbitrary>], iteration_bounds = array<i64: 1>, scalar_prefetch = 0 : i64, scratch_operands = 2 : i64, tpu.core_type = #tpu.core_type<tc>, window_params = [{transform_indices = @transform_0, window_bounds = array<i64: 8, 8, 96>}, {transform_indices = @transform_1, window_bounds = array<i64: 8, 8, 96>}, {transform_indices = @transform_2, window_bounds = array<i64: 8, 8, 1>}, {transform_indices = @transform_3, window_bounds = array<i64: 8, 8, 1>}, {pipeline_mode = #tpu.pipeline_mode<synchronous>, transform_indices = @transform_4, window_bounds = array<i64: 32, 96>}, {pipeline_mode = #tpu.pipeline_mode<synchronous>, transform_indices = @transform_5, window_bounds = array<i64: 32, 96>}, {pipeline_mode = #tpu.pipeline_mode<synchronous>, transform_indices = @transform_6, window_bounds = array<i64: 1, 96>}, {pipeline_mode = #tpu.pipeline_mode<synchronous>, transform_indices = @transform_7, window_bounds = array<i64: 1, 96>}, {transform_indices = @transform_8, window_bounds = array<i64: 8, 8, 32>}, {transform_indices = @transform_9, window_bounds = array<i64: 8, 8, 32>}, {pipeline_mode = #tpu.pipeline_mode<synchronous>, transform_indices = @transform_10, window_bounds = array<i64: 8, 32>}, {pipeline_mode = #tpu.pipeline_mode<synchronous>, transform_indices = @transform_11, window_bounds = array<i64: 8, 32>}]} {
    %c0_i32 = arith.constant 0 : i32
    %0 = arith.cmpi eq, %arg0, %c0_i32 : i32
    %1 = arith.extui %0 : i1 to i32
    %c0_i32_0 = arith.constant 0 : i32
    %2 = arith.cmpi ne, %1, %c0_i32_0 : i32
    scf.if %2 {
      %cst_202 = arith.constant 0.000000e+00 : f32
      %790 = vector.broadcast %cst_202 : f32 to vector<8x32xf32>
      %c0_203 = arith.constant 0 : index
      %c0_204 = arith.constant 0 : index
      %791 = vector.load %arg13[%c0_203, %c0_204] : memref<8x32xf32, #tpu.memory_space<vmem>>, vector<8x32xf32>
      tpu.vector_store %arg13[%c0_203, %c0_204], %790 {strides = array<i32>} : memref<8x32xf32, #tpu.memory_space<vmem>>, vector<8x32xf32>,
      %cst_205 = arith.constant 0.000000e+00 : f32
      %792 = vector.broadcast %cst_205 : f32 to vector<8x32xf32>
      %c0_206 = arith.constant 0 : index
      %c0_207 = arith.constant 0 : index
      %793 = vector.load %arg14[%c0_206, %c0_207] : memref<8x32xf32, #tpu.memory_space<vmem>>, vector<8x32xf32>
      tpu.vector_store %arg14[%c0_206, %c0_207], %792 {strides = array<i32>} : memref<8x32xf32, #tpu.memory_space<vmem>>, vector<8x32xf32>,
    } else {
    }
    %c0 = arith.constant 0 : index
    %c0_1 = arith.constant 0 : index
    %3 = vector.load %arg5[%c0, %c0_1] : memref<32x96xf32, #tpu.memory_space<vmem>>, vector<32x96xf32>
    %c0_2 = arith.constant 0 : index
    %c0_3 = arith.constant 0 : index
    %4 = vector.load %arg6[%c0_2, %c0_3] : memref<32x96xf32, #tpu.memory_space<vmem>>, vector<32x96xf32>
    %c0_4 = arith.constant 0 : index
    %c0_5 = arith.constant 0 : index
    %5 = vector.load %arg7[%c0_4, %c0_5] : memref<1x96xf32, #tpu.memory_space<vmem>>, vector<1x96xf32>
    %c0_6 = arith.constant 0 : index
    %c0_7 = arith.constant 0 : index
    %6 = vector.load %arg8[%c0_6, %c0_7] : memref<1x96xf32, #tpu.memory_space<vmem>>, vector<1x96xf32>
    %c0_8 = arith.constant 0 : index
    %c0_9 = arith.constant 0 : index
    %7 = vector.load %arg13[%c0_8, %c0_9] : memref<8x32xf32, #tpu.memory_space<vmem>>, vector<8x32xf32>
    %c0_10 = arith.constant 0 : index
    %c0_11 = arith.constant 0 : index
    %8 = vector.load %arg14[%c0_10, %c0_11] : memref<8x32xf32, #tpu.memory_space<vmem>>, vector<8x32xf32>
    %c0_i32_12 = arith.constant 0 : i32
    %9 = arith.index_cast %c0_i32_12 : i32 to index
    %c0_13 = arith.constant 0 : index
    %c0_14 = arith.constant 0 : index
    %10 = vector.load %arg1[%9, %c0_13, %c0_14] : memref<8x8x96xf32, #tpu.memory_space<vmem>>, vector<1x8x96xf32>
    %11 = vector.shape_cast %10 : vector<1x8x96xf32> to vector<8x96xf32>
    %12 = arith.index_cast %c0_i32_12 : i32 to index
    %c0_15 = arith.constant 0 : index
    %c0_16 = arith.constant 0 : index
    %13 = vector.load %arg3[%12, %c0_15, %c0_16] : memref<8x8x1xf32, #tpu.memory_space<vmem>>, vector<1x8x1xf32>
    %14 = vector.shape_cast %13 : vector<1x8x1xf32> to vector<8x1xf32>
    %cst = arith.constant dense<0.000000e+00> : vector<8x96xf32>
    %15 = tpu.matmul %7, %3, %cst {dimension_numbers = #tpu.dot_dimension_numbers<[1], [0], [0], [1], [0, 0, 1, 1], [], []>} : vector<8x32xf32>, vector<32x96xf32>, vector<8x96xf32> -> vector<8x96xf32>
    %16 = vector.broadcast %5 : vector<1x96xf32> to vector<8x96xf32>
    %17 = arith.addf %15, %16 : vector<8x96xf32>
    %18 = vector.extract_strided_slice %11 {offsets = [0, 0], sizes = [8, 32], strides = [1, 1]} : vector<8x96xf32> to vector<8x32xf32>
    %19 = vector.extract_strided_slice %17 {offsets = [0, 0], sizes = [8, 32], strides = [1, 1]} : vector<8x96xf32> to vector<8x32xf32>
    %20 = arith.addf %18, %19 : vector<8x32xf32>
    %21 = arith.negf %20 : vector<8x32xf32>
    %22 = math.exp %21 : vector<8x32xf32>
    %cst_17 = arith.constant 1.000000e+00 : f32
    %23 = vector.broadcast %cst_17 : f32 to vector<8x32xf32>
    %24 = arith.addf %23, %22 : vector<8x32xf32>
    %25 = arith.divf %23, %24 : vector<8x32xf32>
    %26 = vector.extract_strided_slice %11 {offsets = [0, 32], sizes = [8, 32], strides = [1, 1]} : vector<8x96xf32> to vector<8x32xf32>
    %27 = vector.extract_strided_slice %17 {offsets = [0, 32], sizes = [8, 32], strides = [1, 1]} : vector<8x96xf32> to vector<8x32xf32>
    %28 = arith.addf %26, %27 : vector<8x32xf32>
    %29 = arith.negf %28 : vector<8x32xf32>
    %30 = math.exp %29 : vector<8x32xf32>
    %cst_18 = arith.constant 1.000000e+00 : f32
    %31 = vector.broadcast %cst_18 : f32 to vector<8x32xf32>
    %32 = arith.addf %31, %30 : vector<8x32xf32>
    %33 = arith.divf %31, %32 : vector<8x32xf32>
    %34 = vector.extract_strided_slice %11 {offsets = [0, 64], sizes = [8, 32], strides = [1, 1]} : vector<8x96xf32> to vector<8x32xf32>
    %35 = vector.extract_strided_slice %17 {offsets = [0, 64], sizes = [8, 32], strides = [1, 1]} : vector<8x96xf32> to vector<8x32xf32>
    %36 = arith.mulf %25, %35 : vector<8x32xf32>
    %37 = arith.addf %34, %36 : vector<8x32xf32>
    %38 = math.tanh %37 : vector<8x32xf32>
    %cst_19 = arith.constant 1.000000e+00 : f32
    %39 = vector.broadcast %cst_19 : f32 to vector<8x32xf32>
    %40 = arith.subf %39, %33 : vector<8x32xf32>
    %41 = arith.mulf %40, %38 : vector<8x32xf32>
    %42 = arith.mulf %33, %7 : vector<8x32xf32>
    %43 = arith.addf %41, %42 : vector<8x32xf32>
    %44 = vector.broadcast %14 : vector<8x1xf32> to vector<8x32xf32>
    %45 = arith.mulf %44, %43 : vector<8x32xf32>
    %cst_20 = arith.constant 1.000000e+00 : f32
    %46 = vector.broadcast %cst_20 : f32 to vector<8x1xf32>
    %47 = arith.subf %46, %14 : vector<8x1xf32>
    %48 = vector.broadcast %47 : vector<8x1xf32> to vector<8x32xf32>
    %49 = arith.mulf %48, %7 : vector<8x32xf32>
    %50 = arith.addf %45, %49 : vector<8x32xf32>
    %51 = vector.broadcast %14 : vector<8x1xf32> to vector<8x32xf32>
    %52 = arith.mulf %51, %43 : vector<8x32xf32>
    %53 = arith.index_cast %c0_i32_12 : i32 to index
    %c0_21 = arith.constant 0 : index
    %c0_22 = arith.constant 0 : index
    %54 = vector.load %arg9[%53, %c0_21, %c0_22] : memref<8x8x32xf32, #tpu.memory_space<vmem>>, vector<1x8x32xf32>
    %55 = vector.shape_cast %54 : vector<1x8x32xf32> to vector<8x32xf32>
    %56 = vector.shape_cast %52 : vector<8x32xf32> to vector<1x8x32xf32>
    tpu.vector_store %arg9[%53, %c0_21, %c0_22], %56 {strides = array<i32>} : memref<8x8x32xf32, #tpu.memory_space<vmem>>, vector<1x8x32xf32>,
    %c7_i32 = arith.constant 7 : i32
    %57 = arith.subi %c7_i32, %c0_i32_12 : i32
    %58 = arith.index_cast %57 : i32 to index
    %c0_23 = arith.constant 0 : index
    %c0_24 = arith.constant 0 : index
    %59 = vector.load %arg2[%58, %c0_23, %c0_24] : memref<8x8x96xf32, #tpu.memory_space<vmem>>, vector<1x8x96xf32>
    %60 = vector.shape_cast %59 : vector<1x8x96xf32> to vector<8x96xf32>
    %61 = arith.index_cast %57 : i32 to index
    %c0_25 = arith.constant 0 : index
    %c0_26 = arith.constant 0 : index
    %62 = vector.load %arg4[%61, %c0_25, %c0_26] : memref<8x8x1xf32, #tpu.memory_space<vmem>>, vector<1x8x1xf32>
    %63 = vector.shape_cast %62 : vector<1x8x1xf32> to vector<8x1xf32>
    %cst_27 = arith.constant dense<0.000000e+00> : vector<8x96xf32>
    %64 = tpu.matmul %8, %4, %cst_27 {dimension_numbers = #tpu.dot_dimension_numbers<[1], [0], [0], [1], [0, 0, 1, 1], [], []>} : vector<8x32xf32>, vector<32x96xf32>, vector<8x96xf32> -> vector<8x96xf32>
    %65 = vector.broadcast %6 : vector<1x96xf32> to vector<8x96xf32>
    %66 = arith.addf %64, %65 : vector<8x96xf32>
    %67 = vector.extract_strided_slice %60 {offsets = [0, 0], sizes = [8, 32], strides = [1, 1]} : vector<8x96xf32> to vector<8x32xf32>
    %68 = vector.extract_strided_slice %66 {offsets = [0, 0], sizes = [8, 32], strides = [1, 1]} : vector<8x96xf32> to vector<8x32xf32>
    %69 = arith.addf %67, %68 : vector<8x32xf32>
    %70 = arith.negf %69 : vector<8x32xf32>
    %71 = math.exp %70 : vector<8x32xf32>
    %cst_28 = arith.constant 1.000000e+00 : f32
    %72 = vector.broadcast %cst_28 : f32 to vector<8x32xf32>
    %73 = arith.addf %72, %71 : vector<8x32xf32>
    %74 = arith.divf %72, %73 : vector<8x32xf32>
    %75 = vector.extract_strided_slice %60 {offsets = [0, 32], sizes = [8, 32], strides = [1, 1]} : vector<8x96xf32> to vector<8x32xf32>
    %76 = vector.extract_strided_slice %66 {offsets = [0, 32], sizes = [8, 32], strides = [1, 1]} : vector<8x96xf32> to vector<8x32xf32>
    %77 = arith.addf %75, %76 : vector<8x32xf32>
    %78 = arith.negf %77 : vector<8x32xf32>
    %79 = math.exp %78 : vector<8x32xf32>
    %cst_29 = arith.constant 1.000000e+00 : f32
    %80 = vector.broadcast %cst_29 : f32 to vector<8x32xf32>
    %81 = arith.addf %80, %79 : vector<8x32xf32>
    %82 = arith.divf %80, %81 : vector<8x32xf32>
    %83 = vector.extract_strided_slice %60 {offsets = [0, 64], sizes = [8, 32], strides = [1, 1]} : vector<8x96xf32> to vector<8x32xf32>
    %84 = vector.extract_strided_slice %66 {offsets = [0, 64], sizes = [8, 32], strides = [1, 1]} : vector<8x96xf32> to vector<8x32xf32>
    %85 = arith.mulf %74, %84 : vector<8x32xf32>
    %86 = arith.addf %83, %85 : vector<8x32xf32>
    %87 = math.tanh %86 : vector<8x32xf32>
    %cst_30 = arith.constant 1.000000e+00 : f32
    %88 = vector.broadcast %cst_30 : f32 to vector<8x32xf32>
    %89 = arith.subf %88, %82 : vector<8x32xf32>
    %90 = arith.mulf %89, %87 : vector<8x32xf32>
    %91 = arith.mulf %82, %8 : vector<8x32xf32>
    %92 = arith.addf %90, %91 : vector<8x32xf32>
    %93 = vector.broadcast %63 : vector<8x1xf32> to vector<8x32xf32>
    %94 = arith.mulf %93, %92 : vector<8x32xf32>
    %cst_31 = arith.constant 1.000000e+00 : f32
    %95 = vector.broadcast %cst_31 : f32 to vector<8x1xf32>
    %96 = arith.subf %95, %63 : vector<8x1xf32>
    %97 = vector.broadcast %96 : vector<8x1xf32> to vector<8x32xf32>
    %98 = arith.mulf %97, %8 : vector<8x32xf32>
    %99 = arith.addf %94, %98 : vector<8x32xf32>
    %100 = vector.broadcast %63 : vector<8x1xf32> to vector<8x32xf32>
    %101 = arith.mulf %100, %92 : vector<8x32xf32>
    %102 = arith.index_cast %57 : i32 to index
    %c0_32 = arith.constant 0 : index
    %c0_33 = arith.constant 0 : index
    %103 = vector.load %arg10[%102, %c0_32, %c0_33] : memref<8x8x32xf32, #tpu.memory_space<vmem>>, vector<1x8x32xf32>
    %104 = vector.shape_cast %103 : vector<1x8x32xf32> to vector<8x32xf32>
    %105 = vector.shape_cast %101 : vector<8x32xf32> to vector<1x8x32xf32>
    tpu.vector_store %arg10[%102, %c0_32, %c0_33], %105 {strides = array<i32>} : memref<8x8x32xf32, #tpu.memory_space<vmem>>, vector<1x8x32xf32>,
    %c1_i32 = arith.constant 1 : i32
    %106 = arith.index_cast %c1_i32 : i32 to index
    %c0_34 = arith.constant 0 : index
    %c0_35 = arith.constant 0 : index
    %107 = vector.load %arg1[%106, %c0_34, %c0_35] : memref<8x8x96xf32, #tpu.memory_space<vmem>>, vector<1x8x96xf32>
    %108 = vector.shape_cast %107 : vector<1x8x96xf32> to vector<8x96xf32>
    %109 = arith.index_cast %c1_i32 : i32 to index
    %c0_36 = arith.constant 0 : index
    %c0_37 = arith.constant 0 : index
    %110 = vector.load %arg3[%109, %c0_36, %c0_37] : memref<8x8x1xf32, #tpu.memory_space<vmem>>, vector<1x8x1xf32>
    %111 = vector.shape_cast %110 : vector<1x8x1xf32> to vector<8x1xf32>
    %cst_38 = arith.constant dense<0.000000e+00> : vector<8x96xf32>
    %112 = tpu.matmul %50, %3, %cst_38 {dimension_numbers = #tpu.dot_dimension_numbers<[1], [0], [0], [1], [0, 0, 1, 1], [], []>} : vector<8x32xf32>, vector<32x96xf32>, vector<8x96xf32> -> vector<8x96xf32>
    %113 = vector.broadcast %5 : vector<1x96xf32> to vector<8x96xf32>
    %114 = arith.addf %112, %113 : vector<8x96xf32>
    %115 = vector.extract_strided_slice %108 {offsets = [0, 0], sizes = [8, 32], strides = [1, 1]} : vector<8x96xf32> to vector<8x32xf32>
    %116 = vector.extract_strided_slice %114 {offsets = [0, 0], sizes = [8, 32], strides = [1, 1]} : vector<8x96xf32> to vector<8x32xf32>
    %117 = arith.addf %115, %116 : vector<8x32xf32>
    %118 = arith.negf %117 : vector<8x32xf32>
    %119 = math.exp %118 : vector<8x32xf32>
    %cst_39 = arith.constant 1.000000e+00 : f32
    %120 = vector.broadcast %cst_39 : f32 to vector<8x32xf32>
    %121 = arith.addf %120, %119 : vector<8x32xf32>
    %122 = arith.divf %120, %121 : vector<8x32xf32>
    %123 = vector.extract_strided_slice %108 {offsets = [0, 32], sizes = [8, 32], strides = [1, 1]} : vector<8x96xf32> to vector<8x32xf32>
    %124 = vector.extract_strided_slice %114 {offsets = [0, 32], sizes = [8, 32], strides = [1, 1]} : vector<8x96xf32> to vector<8x32xf32>
    %125 = arith.addf %123, %124 : vector<8x32xf32>
    %126 = arith.negf %125 : vector<8x32xf32>
    %127 = math.exp %126 : vector<8x32xf32>
    %cst_40 = arith.constant 1.000000e+00 : f32
    %128 = vector.broadcast %cst_40 : f32 to vector<8x32xf32>
    %129 = arith.addf %128, %127 : vector<8x32xf32>
    %130 = arith.divf %128, %129 : vector<8x32xf32>
    %131 = vector.extract_strided_slice %108 {offsets = [0, 64], sizes = [8, 32], strides = [1, 1]} : vector<8x96xf32> to vector<8x32xf32>
    %132 = vector.extract_strided_slice %114 {offsets = [0, 64], sizes = [8, 32], strides = [1, 1]} : vector<8x96xf32> to vector<8x32xf32>
    %133 = arith.mulf %122, %132 : vector<8x32xf32>
    %134 = arith.addf %131, %133 : vector<8x32xf32>
    %135 = math.tanh %134 : vector<8x32xf32>
    %cst_41 = arith.constant 1.000000e+00 : f32
    %136 = vector.broadcast %cst_41 : f32 to vector<8x32xf32>
    %137 = arith.subf %136, %130 : vector<8x32xf32>
    %138 = arith.mulf %137, %135 : vector<8x32xf32>
    %139 = arith.mulf %130, %50 : vector<8x32xf32>
    %140 = arith.addf %138, %139 : vector<8x32xf32>
    %141 = vector.broadcast %111 : vector<8x1xf32> to vector<8x32xf32>
    %142 = arith.mulf %141, %140 : vector<8x32xf32>
    %cst_42 = arith.constant 1.000000e+00 : f32
    %143 = vector.broadcast %cst_42 : f32 to vector<8x1xf32>
    %144 = arith.subf %143, %111 : vector<8x1xf32>
    %145 = vector.broadcast %144 : vector<8x1xf32> to vector<8x32xf32>
    %146 = arith.mulf %145, %50 : vector<8x32xf32>
    %147 = arith.addf %142, %146 : vector<8x32xf32>
    %148 = vector.broadcast %111 : vector<8x1xf32> to vector<8x32xf32>
    %149 = arith.mulf %148, %140 : vector<8x32xf32>
    %150 = arith.index_cast %c1_i32 : i32 to index
    %c0_43 = arith.constant 0 : index
    %c0_44 = arith.constant 0 : index
    %151 = vector.load %arg9[%150, %c0_43, %c0_44] : memref<8x8x32xf32, #tpu.memory_space<vmem>>, vector<1x8x32xf32>
    %152 = vector.shape_cast %151 : vector<1x8x32xf32> to vector<8x32xf32>
    %153 = vector.shape_cast %149 : vector<8x32xf32> to vector<1x8x32xf32>
    tpu.vector_store %arg9[%150, %c0_43, %c0_44], %153 {strides = array<i32>} : memref<8x8x32xf32, #tpu.memory_space<vmem>>, vector<1x8x32xf32>,
    %c7_i32_45 = arith.constant 7 : i32
    %154 = arith.subi %c7_i32_45, %c1_i32 : i32
    %155 = arith.index_cast %154 : i32 to index
    %c0_46 = arith.constant 0 : index
    %c0_47 = arith.constant 0 : index
    %156 = vector.load %arg2[%155, %c0_46, %c0_47] : memref<8x8x96xf32, #tpu.memory_space<vmem>>, vector<1x8x96xf32>
    %157 = vector.shape_cast %156 : vector<1x8x96xf32> to vector<8x96xf32>
    %158 = arith.index_cast %154 : i32 to index
    %c0_48 = arith.constant 0 : index
    %c0_49 = arith.constant 0 : index
    %159 = vector.load %arg4[%158, %c0_48, %c0_49] : memref<8x8x1xf32, #tpu.memory_space<vmem>>, vector<1x8x1xf32>
    %160 = vector.shape_cast %159 : vector<1x8x1xf32> to vector<8x1xf32>
    %cst_50 = arith.constant dense<0.000000e+00> : vector<8x96xf32>
    %161 = tpu.matmul %99, %4, %cst_50 {dimension_numbers = #tpu.dot_dimension_numbers<[1], [0], [0], [1], [0, 0, 1, 1], [], []>} : vector<8x32xf32>, vector<32x96xf32>, vector<8x96xf32> -> vector<8x96xf32>
    %162 = vector.broadcast %6 : vector<1x96xf32> to vector<8x96xf32>
    %163 = arith.addf %161, %162 : vector<8x96xf32>
    %164 = vector.extract_strided_slice %157 {offsets = [0, 0], sizes = [8, 32], strides = [1, 1]} : vector<8x96xf32> to vector<8x32xf32>
    %165 = vector.extract_strided_slice %163 {offsets = [0, 0], sizes = [8, 32], strides = [1, 1]} : vector<8x96xf32> to vector<8x32xf32>
    %166 = arith.addf %164, %165 : vector<8x32xf32>
    %167 = arith.negf %166 : vector<8x32xf32>
    %168 = math.exp %167 : vector<8x32xf32>
    %cst_51 = arith.constant 1.000000e+00 : f32
    %169 = vector.broadcast %cst_51 : f32 to vector<8x32xf32>
    %170 = arith.addf %169, %168 : vector<8x32xf32>
    %171 = arith.divf %169, %170 : vector<8x32xf32>
    %172 = vector.extract_strided_slice %157 {offsets = [0, 32], sizes = [8, 32], strides = [1, 1]} : vector<8x96xf32> to vector<8x32xf32>
    %173 = vector.extract_strided_slice %163 {offsets = [0, 32], sizes = [8, 32], strides = [1, 1]} : vector<8x96xf32> to vector<8x32xf32>
    %174 = arith.addf %172, %173 : vector<8x32xf32>
    %175 = arith.negf %174 : vector<8x32xf32>
    %176 = math.exp %175 : vector<8x32xf32>
    %cst_52 = arith.constant 1.000000e+00 : f32
    %177 = vector.broadcast %cst_52 : f32 to vector<8x32xf32>
    %178 = arith.addf %177, %176 : vector<8x32xf32>
    %179 = arith.divf %177, %178 : vector<8x32xf32>
    %180 = vector.extract_strided_slice %157 {offsets = [0, 64], sizes = [8, 32], strides = [1, 1]} : vector<8x96xf32> to vector<8x32xf32>
    %181 = vector.extract_strided_slice %163 {offsets = [0, 64], sizes = [8, 32], strides = [1, 1]} : vector<8x96xf32> to vector<8x32xf32>
    %182 = arith.mulf %171, %181 : vector<8x32xf32>
    %183 = arith.addf %180, %182 : vector<8x32xf32>
    %184 = math.tanh %183 : vector<8x32xf32>
    %cst_53 = arith.constant 1.000000e+00 : f32
    %185 = vector.broadcast %cst_53 : f32 to vector<8x32xf32>
    %186 = arith.subf %185, %179 : vector<8x32xf32>
    %187 = arith.mulf %186, %184 : vector<8x32xf32>
    %188 = arith.mulf %179, %99 : vector<8x32xf32>
    %189 = arith.addf %187, %188 : vector<8x32xf32>
    %190 = vector.broadcast %160 : vector<8x1xf32> to vector<8x32xf32>
    %191 = arith.mulf %190, %189 : vector<8x32xf32>
    %cst_54 = arith.constant 1.000000e+00 : f32
    %192 = vector.broadcast %cst_54 : f32 to vector<8x1xf32>
    %193 = arith.subf %192, %160 : vector<8x1xf32>
    %194 = vector.broadcast %193 : vector<8x1xf32> to vector<8x32xf32>
    %195 = arith.mulf %194, %99 : vector<8x32xf32>
    %196 = arith.addf %191, %195 : vector<8x32xf32>
    %197 = vector.broadcast %160 : vector<8x1xf32> to vector<8x32xf32>
    %198 = arith.mulf %197, %189 : vector<8x32xf32>
    %199 = arith.index_cast %154 : i32 to index
    %c0_55 = arith.constant 0 : index
    %c0_56 = arith.constant 0 : index
    %200 = vector.load %arg10[%199, %c0_55, %c0_56] : memref<8x8x32xf32, #tpu.memory_space<vmem>>, vector<1x8x32xf32>
    %201 = vector.shape_cast %200 : vector<1x8x32xf32> to vector<8x32xf32>
    %202 = vector.shape_cast %198 : vector<8x32xf32> to vector<1x8x32xf32>
    tpu.vector_store %arg10[%199, %c0_55, %c0_56], %202 {strides = array<i32>} : memref<8x8x32xf32, #tpu.memory_space<vmem>>, vector<1x8x32xf32>,
    %c2_i32 = arith.constant 2 : i32
    %203 = arith.index_cast %c2_i32 : i32 to index
    %c0_57 = arith.constant 0 : index
    %c0_58 = arith.constant 0 : index
    %204 = vector.load %arg1[%203, %c0_57, %c0_58] : memref<8x8x96xf32, #tpu.memory_space<vmem>>, vector<1x8x96xf32>
    %205 = vector.shape_cast %204 : vector<1x8x96xf32> to vector<8x96xf32>
    %206 = arith.index_cast %c2_i32 : i32 to index
    %c0_59 = arith.constant 0 : index
    %c0_60 = arith.constant 0 : index
    %207 = vector.load %arg3[%206, %c0_59, %c0_60] : memref<8x8x1xf32, #tpu.memory_space<vmem>>, vector<1x8x1xf32>
    %208 = vector.shape_cast %207 : vector<1x8x1xf32> to vector<8x1xf32>
    %cst_61 = arith.constant dense<0.000000e+00> : vector<8x96xf32>
    %209 = tpu.matmul %147, %3, %cst_61 {dimension_numbers = #tpu.dot_dimension_numbers<[1], [0], [0], [1], [0, 0, 1, 1], [], []>} : vector<8x32xf32>, vector<32x96xf32>, vector<8x96xf32> -> vector<8x96xf32>
    %210 = vector.broadcast %5 : vector<1x96xf32> to vector<8x96xf32>
    %211 = arith.addf %209, %210 : vector<8x96xf32>
    %212 = vector.extract_strided_slice %205 {offsets = [0, 0], sizes = [8, 32], strides = [1, 1]} : vector<8x96xf32> to vector<8x32xf32>
    %213 = vector.extract_strided_slice %211 {offsets = [0, 0], sizes = [8, 32], strides = [1, 1]} : vector<8x96xf32> to vector<8x32xf32>
    %214 = arith.addf %212, %213 : vector<8x32xf32>
    %215 = arith.negf %214 : vector<8x32xf32>
    %216 = math.exp %215 : vector<8x32xf32>
    %cst_62 = arith.constant 1.000000e+00 : f32
    %217 = vector.broadcast %cst_62 : f32 to vector<8x32xf32>
    %218 = arith.addf %217, %216 : vector<8x32xf32>
    %219 = arith.divf %217, %218 : vector<8x32xf32>
    %220 = vector.extract_strided_slice %205 {offsets = [0, 32], sizes = [8, 32], strides = [1, 1]} : vector<8x96xf32> to vector<8x32xf32>
    %221 = vector.extract_strided_slice %211 {offsets = [0, 32], sizes = [8, 32], strides = [1, 1]} : vector<8x96xf32> to vector<8x32xf32>
    %222 = arith.addf %220, %221 : vector<8x32xf32>
    %223 = arith.negf %222 : vector<8x32xf32>
    %224 = math.exp %223 : vector<8x32xf32>
    %cst_63 = arith.constant 1.000000e+00 : f32
    %225 = vector.broadcast %cst_63 : f32 to vector<8x32xf32>
    %226 = arith.addf %225, %224 : vector<8x32xf32>
    %227 = arith.divf %225, %226 : vector<8x32xf32>
    %228 = vector.extract_strided_slice %205 {offsets = [0, 64], sizes = [8, 32], strides = [1, 1]} : vector<8x96xf32> to vector<8x32xf32>
    %229 = vector.extract_strided_slice %211 {offsets = [0, 64], sizes = [8, 32], strides = [1, 1]} : vector<8x96xf32> to vector<8x32xf32>
    %230 = arith.mulf %219, %229 : vector<8x32xf32>
    %231 = arith.addf %228, %230 : vector<8x32xf32>
    %232 = math.tanh %231 : vector<8x32xf32>
    %cst_64 = arith.constant 1.000000e+00 : f32
    %233 = vector.broadcast %cst_64 : f32 to vector<8x32xf32>
    %234 = arith.subf %233, %227 : vector<8x32xf32>
    %235 = arith.mulf %234, %232 : vector<8x32xf32>
    %236 = arith.mulf %227, %147 : vector<8x32xf32>
    %237 = arith.addf %235, %236 : vector<8x32xf32>
    %238 = vector.broadcast %208 : vector<8x1xf32> to vector<8x32xf32>
    %239 = arith.mulf %238, %237 : vector<8x32xf32>
    %cst_65 = arith.constant 1.000000e+00 : f32
    %240 = vector.broadcast %cst_65 : f32 to vector<8x1xf32>
    %241 = arith.subf %240, %208 : vector<8x1xf32>
    %242 = vector.broadcast %241 : vector<8x1xf32> to vector<8x32xf32>
    %243 = arith.mulf %242, %147 : vector<8x32xf32>
    %244 = arith.addf %239, %243 : vector<8x32xf32>
    %245 = vector.broadcast %208 : vector<8x1xf32> to vector<8x32xf32>
    %246 = arith.mulf %245, %237 : vector<8x32xf32>
    %247 = arith.index_cast %c2_i32 : i32 to index
    %c0_66 = arith.constant 0 : index
    %c0_67 = arith.constant 0 : index
    %248 = vector.load %arg9[%247, %c0_66, %c0_67] : memref<8x8x32xf32, #tpu.memory_space<vmem>>, vector<1x8x32xf32>
    %249 = vector.shape_cast %248 : vector<1x8x32xf32> to vector<8x32xf32>
    %250 = vector.shape_cast %246 : vector<8x32xf32> to vector<1x8x32xf32>
    tpu.vector_store %arg9[%247, %c0_66, %c0_67], %250 {strides = array<i32>} : memref<8x8x32xf32, #tpu.memory_space<vmem>>, vector<1x8x32xf32>,
    %c7_i32_68 = arith.constant 7 : i32
    %251 = arith.subi %c7_i32_68, %c2_i32 : i32
    %252 = arith.index_cast %251 : i32 to index
    %c0_69 = arith.constant 0 : index
    %c0_70 = arith.constant 0 : index
    %253 = vector.load %arg2[%252, %c0_69, %c0_70] : memref<8x8x96xf32, #tpu.memory_space<vmem>>, vector<1x8x96xf32>
    %254 = vector.shape_cast %253 : vector<1x8x96xf32> to vector<8x96xf32>
    %255 = arith.index_cast %251 : i32 to index
    %c0_71 = arith.constant 0 : index
    %c0_72 = arith.constant 0 : index
    %256 = vector.load %arg4[%255, %c0_71, %c0_72] : memref<8x8x1xf32, #tpu.memory_space<vmem>>, vector<1x8x1xf32>
    %257 = vector.shape_cast %256 : vector<1x8x1xf32> to vector<8x1xf32>
    %cst_73 = arith.constant dense<0.000000e+00> : vector<8x96xf32>
    %258 = tpu.matmul %196, %4, %cst_73 {dimension_numbers = #tpu.dot_dimension_numbers<[1], [0], [0], [1], [0, 0, 1, 1], [], []>} : vector<8x32xf32>, vector<32x96xf32>, vector<8x96xf32> -> vector<8x96xf32>
    %259 = vector.broadcast %6 : vector<1x96xf32> to vector<8x96xf32>
    %260 = arith.addf %258, %259 : vector<8x96xf32>
    %261 = vector.extract_strided_slice %254 {offsets = [0, 0], sizes = [8, 32], strides = [1, 1]} : vector<8x96xf32> to vector<8x32xf32>
    %262 = vector.extract_strided_slice %260 {offsets = [0, 0], sizes = [8, 32], strides = [1, 1]} : vector<8x96xf32> to vector<8x32xf32>
    %263 = arith.addf %261, %262 : vector<8x32xf32>
    %264 = arith.negf %263 : vector<8x32xf32>
    %265 = math.exp %264 : vector<8x32xf32>
    %cst_74 = arith.constant 1.000000e+00 : f32
    %266 = vector.broadcast %cst_74 : f32 to vector<8x32xf32>
    %267 = arith.addf %266, %265 : vector<8x32xf32>
    %268 = arith.divf %266, %267 : vector<8x32xf32>
    %269 = vector.extract_strided_slice %254 {offsets = [0, 32], sizes = [8, 32], strides = [1, 1]} : vector<8x96xf32> to vector<8x32xf32>
    %270 = vector.extract_strided_slice %260 {offsets = [0, 32], sizes = [8, 32], strides = [1, 1]} : vector<8x96xf32> to vector<8x32xf32>
    %271 = arith.addf %269, %270 : vector<8x32xf32>
    %272 = arith.negf %271 : vector<8x32xf32>
    %273 = math.exp %272 : vector<8x32xf32>
    %cst_75 = arith.constant 1.000000e+00 : f32
    %274 = vector.broadcast %cst_75 : f32 to vector<8x32xf32>
    %275 = arith.addf %274, %273 : vector<8x32xf32>
    %276 = arith.divf %274, %275 : vector<8x32xf32>
    %277 = vector.extract_strided_slice %254 {offsets = [0, 64], sizes = [8, 32], strides = [1, 1]} : vector<8x96xf32> to vector<8x32xf32>
    %278 = vector.extract_strided_slice %260 {offsets = [0, 64], sizes = [8, 32], strides = [1, 1]} : vector<8x96xf32> to vector<8x32xf32>
    %279 = arith.mulf %268, %278 : vector<8x32xf32>
    %280 = arith.addf %277, %279 : vector<8x32xf32>
    %281 = math.tanh %280 : vector<8x32xf32>
    %cst_76 = arith.constant 1.000000e+00 : f32
    %282 = vector.broadcast %cst_76 : f32 to vector<8x32xf32>
    %283 = arith.subf %282, %276 : vector<8x32xf32>
    %284 = arith.mulf %283, %281 : vector<8x32xf32>
    %285 = arith.mulf %276, %196 : vector<8x32xf32>
    %286 = arith.addf %284, %285 : vector<8x32xf32>
    %287 = vector.broadcast %257 : vector<8x1xf32> to vector<8x32xf32>
    %288 = arith.mulf %287, %286 : vector<8x32xf32>
    %cst_77 = arith.constant 1.000000e+00 : f32
    %289 = vector.broadcast %cst_77 : f32 to vector<8x1xf32>
    %290 = arith.subf %289, %257 : vector<8x1xf32>
    %291 = vector.broadcast %290 : vector<8x1xf32> to vector<8x32xf32>
    %292 = arith.mulf %291, %196 : vector<8x32xf32>
    %293 = arith.addf %288, %292 : vector<8x32xf32>
    %294 = vector.broadcast %257 : vector<8x1xf32> to vector<8x32xf32>
    %295 = arith.mulf %294, %286 : vector<8x32xf32>
    %296 = arith.index_cast %251 : i32 to index
    %c0_78 = arith.constant 0 : index
    %c0_79 = arith.constant 0 : index
    %297 = vector.load %arg10[%296, %c0_78, %c0_79] : memref<8x8x32xf32, #tpu.memory_space<vmem>>, vector<1x8x32xf32>
    %298 = vector.shape_cast %297 : vector<1x8x32xf32> to vector<8x32xf32>
    %299 = vector.shape_cast %295 : vector<8x32xf32> to vector<1x8x32xf32>
    tpu.vector_store %arg10[%296, %c0_78, %c0_79], %299 {strides = array<i32>} : memref<8x8x32xf32, #tpu.memory_space<vmem>>, vector<1x8x32xf32>,
    %c3_i32 = arith.constant 3 : i32
    %300 = arith.index_cast %c3_i32 : i32 to index
    %c0_80 = arith.constant 0 : index
    %c0_81 = arith.constant 0 : index
    %301 = vector.load %arg1[%300, %c0_80, %c0_81] : memref<8x8x96xf32, #tpu.memory_space<vmem>>, vector<1x8x96xf32>
    %302 = vector.shape_cast %301 : vector<1x8x96xf32> to vector<8x96xf32>
    %303 = arith.index_cast %c3_i32 : i32 to index
    %c0_82 = arith.constant 0 : index
    %c0_83 = arith.constant 0 : index
    %304 = vector.load %arg3[%303, %c0_82, %c0_83] : memref<8x8x1xf32, #tpu.memory_space<vmem>>, vector<1x8x1xf32>
    %305 = vector.shape_cast %304 : vector<1x8x1xf32> to vector<8x1xf32>
    %cst_84 = arith.constant dense<0.000000e+00> : vector<8x96xf32>
    %306 = tpu.matmul %244, %3, %cst_84 {dimension_numbers = #tpu.dot_dimension_numbers<[1], [0], [0], [1], [0, 0, 1, 1], [], []>} : vector<8x32xf32>, vector<32x96xf32>, vector<8x96xf32> -> vector<8x96xf32>
    %307 = vector.broadcast %5 : vector<1x96xf32> to vector<8x96xf32>
    %308 = arith.addf %306, %307 : vector<8x96xf32>
    %309 = vector.extract_strided_slice %302 {offsets = [0, 0], sizes = [8, 32], strides = [1, 1]} : vector<8x96xf32> to vector<8x32xf32>
    %310 = vector.extract_strided_slice %308 {offsets = [0, 0], sizes = [8, 32], strides = [1, 1]} : vector<8x96xf32> to vector<8x32xf32>
    %311 = arith.addf %309, %310 : vector<8x32xf32>
    %312 = arith.negf %311 : vector<8x32xf32>
    %313 = math.exp %312 : vector<8x32xf32>
    %cst_85 = arith.constant 1.000000e+00 : f32
    %314 = vector.broadcast %cst_85 : f32 to vector<8x32xf32>
    %315 = arith.addf %314, %313 : vector<8x32xf32>
    %316 = arith.divf %314, %315 : vector<8x32xf32>
    %317 = vector.extract_strided_slice %302 {offsets = [0, 32], sizes = [8, 32], strides = [1, 1]} : vector<8x96xf32> to vector<8x32xf32>
    %318 = vector.extract_strided_slice %308 {offsets = [0, 32], sizes = [8, 32], strides = [1, 1]} : vector<8x96xf32> to vector<8x32xf32>
    %319 = arith.addf %317, %318 : vector<8x32xf32>
    %320 = arith.negf %319 : vector<8x32xf32>
    %321 = math.exp %320 : vector<8x32xf32>
    %cst_86 = arith.constant 1.000000e+00 : f32
    %322 = vector.broadcast %cst_86 : f32 to vector<8x32xf32>
    %323 = arith.addf %322, %321 : vector<8x32xf32>
    %324 = arith.divf %322, %323 : vector<8x32xf32>
    %325 = vector.extract_strided_slice %302 {offsets = [0, 64], sizes = [8, 32], strides = [1, 1]} : vector<8x96xf32> to vector<8x32xf32>
    %326 = vector.extract_strided_slice %308 {offsets = [0, 64], sizes = [8, 32], strides = [1, 1]} : vector<8x96xf32> to vector<8x32xf32>
    %327 = arith.mulf %316, %326 : vector<8x32xf32>
    %328 = arith.addf %325, %327 : vector<8x32xf32>
    %329 = math.tanh %328 : vector<8x32xf32>
    %cst_87 = arith.constant 1.000000e+00 : f32
    %330 = vector.broadcast %cst_87 : f32 to vector<8x32xf32>
    %331 = arith.subf %330, %324 : vector<8x32xf32>
    %332 = arith.mulf %331, %329 : vector<8x32xf32>
    %333 = arith.mulf %324, %244 : vector<8x32xf32>
    %334 = arith.addf %332, %333 : vector<8x32xf32>
    %335 = vector.broadcast %305 : vector<8x1xf32> to vector<8x32xf32>
    %336 = arith.mulf %335, %334 : vector<8x32xf32>
    %cst_88 = arith.constant 1.000000e+00 : f32
    %337 = vector.broadcast %cst_88 : f32 to vector<8x1xf32>
    %338 = arith.subf %337, %305 : vector<8x1xf32>
    %339 = vector.broadcast %338 : vector<8x1xf32> to vector<8x32xf32>
    %340 = arith.mulf %339, %244 : vector<8x32xf32>
    %341 = arith.addf %336, %340 : vector<8x32xf32>
    %342 = vector.broadcast %305 : vector<8x1xf32> to vector<8x32xf32>
    %343 = arith.mulf %342, %334 : vector<8x32xf32>
    %344 = arith.index_cast %c3_i32 : i32 to index
    %c0_89 = arith.constant 0 : index
    %c0_90 = arith.constant 0 : index
    %345 = vector.load %arg9[%344, %c0_89, %c0_90] : memref<8x8x32xf32, #tpu.memory_space<vmem>>, vector<1x8x32xf32>
    %346 = vector.shape_cast %345 : vector<1x8x32xf32> to vector<8x32xf32>
    %347 = vector.shape_cast %343 : vector<8x32xf32> to vector<1x8x32xf32>
    tpu.vector_store %arg9[%344, %c0_89, %c0_90], %347 {strides = array<i32>} : memref<8x8x32xf32, #tpu.memory_space<vmem>>, vector<1x8x32xf32>,
    %c7_i32_91 = arith.constant 7 : i32
    %348 = arith.subi %c7_i32_91, %c3_i32 : i32
    %349 = arith.index_cast %348 : i32 to index
    %c0_92 = arith.constant 0 : index
    %c0_93 = arith.constant 0 : index
    %350 = vector.load %arg2[%349, %c0_92, %c0_93] : memref<8x8x96xf32, #tpu.memory_space<vmem>>, vector<1x8x96xf32>
    %351 = vector.shape_cast %350 : vector<1x8x96xf32> to vector<8x96xf32>
    %352 = arith.index_cast %348 : i32 to index
    %c0_94 = arith.constant 0 : index
    %c0_95 = arith.constant 0 : index
    %353 = vector.load %arg4[%352, %c0_94, %c0_95] : memref<8x8x1xf32, #tpu.memory_space<vmem>>, vector<1x8x1xf32>
    %354 = vector.shape_cast %353 : vector<1x8x1xf32> to vector<8x1xf32>
    %cst_96 = arith.constant dense<0.000000e+00> : vector<8x96xf32>
    %355 = tpu.matmul %293, %4, %cst_96 {dimension_numbers = #tpu.dot_dimension_numbers<[1], [0], [0], [1], [0, 0, 1, 1], [], []>} : vector<8x32xf32>, vector<32x96xf32>, vector<8x96xf32> -> vector<8x96xf32>
    %356 = vector.broadcast %6 : vector<1x96xf32> to vector<8x96xf32>
    %357 = arith.addf %355, %356 : vector<8x96xf32>
    %358 = vector.extract_strided_slice %351 {offsets = [0, 0], sizes = [8, 32], strides = [1, 1]} : vector<8x96xf32> to vector<8x32xf32>
    %359 = vector.extract_strided_slice %357 {offsets = [0, 0], sizes = [8, 32], strides = [1, 1]} : vector<8x96xf32> to vector<8x32xf32>
    %360 = arith.addf %358, %359 : vector<8x32xf32>
    %361 = arith.negf %360 : vector<8x32xf32>
    %362 = math.exp %361 : vector<8x32xf32>
    %cst_97 = arith.constant 1.000000e+00 : f32
    %363 = vector.broadcast %cst_97 : f32 to vector<8x32xf32>
    %364 = arith.addf %363, %362 : vector<8x32xf32>
    %365 = arith.divf %363, %364 : vector<8x32xf32>
    %366 = vector.extract_strided_slice %351 {offsets = [0, 32], sizes = [8, 32], strides = [1, 1]} : vector<8x96xf32> to vector<8x32xf32>
    %367 = vector.extract_strided_slice %357 {offsets = [0, 32], sizes = [8, 32], strides = [1, 1]} : vector<8x96xf32> to vector<8x32xf32>
    %368 = arith.addf %366, %367 : vector<8x32xf32>
    %369 = arith.negf %368 : vector<8x32xf32>
    %370 = math.exp %369 : vector<8x32xf32>
    %cst_98 = arith.constant 1.000000e+00 : f32
    %371 = vector.broadcast %cst_98 : f32 to vector<8x32xf32>
    %372 = arith.addf %371, %370 : vector<8x32xf32>
    %373 = arith.divf %371, %372 : vector<8x32xf32>
    %374 = vector.extract_strided_slice %351 {offsets = [0, 64], sizes = [8, 32], strides = [1, 1]} : vector<8x96xf32> to vector<8x32xf32>
    %375 = vector.extract_strided_slice %357 {offsets = [0, 64], sizes = [8, 32], strides = [1, 1]} : vector<8x96xf32> to vector<8x32xf32>
    %376 = arith.mulf %365, %375 : vector<8x32xf32>
    %377 = arith.addf %374, %376 : vector<8x32xf32>
    %378 = math.tanh %377 : vector<8x32xf32>
    %cst_99 = arith.constant 1.000000e+00 : f32
    %379 = vector.broadcast %cst_99 : f32 to vector<8x32xf32>
    %380 = arith.subf %379, %373 : vector<8x32xf32>
    %381 = arith.mulf %380, %378 : vector<8x32xf32>
    %382 = arith.mulf %373, %293 : vector<8x32xf32>
    %383 = arith.addf %381, %382 : vector<8x32xf32>
    %384 = vector.broadcast %354 : vector<8x1xf32> to vector<8x32xf32>
    %385 = arith.mulf %384, %383 : vector<8x32xf32>
    %cst_100 = arith.constant 1.000000e+00 : f32
    %386 = vector.broadcast %cst_100 : f32 to vector<8x1xf32>
    %387 = arith.subf %386, %354 : vector<8x1xf32>
    %388 = vector.broadcast %387 : vector<8x1xf32> to vector<8x32xf32>
    %389 = arith.mulf %388, %293 : vector<8x32xf32>
    %390 = arith.addf %385, %389 : vector<8x32xf32>
    %391 = vector.broadcast %354 : vector<8x1xf32> to vector<8x32xf32>
    %392 = arith.mulf %391, %383 : vector<8x32xf32>
    %393 = arith.index_cast %348 : i32 to index
    %c0_101 = arith.constant 0 : index
    %c0_102 = arith.constant 0 : index
    %394 = vector.load %arg10[%393, %c0_101, %c0_102] : memref<8x8x32xf32, #tpu.memory_space<vmem>>, vector<1x8x32xf32>
    %395 = vector.shape_cast %394 : vector<1x8x32xf32> to vector<8x32xf32>
    %396 = vector.shape_cast %392 : vector<8x32xf32> to vector<1x8x32xf32>
    tpu.vector_store %arg10[%393, %c0_101, %c0_102], %396 {strides = array<i32>} : memref<8x8x32xf32, #tpu.memory_space<vmem>>, vector<1x8x32xf32>,
    %c4_i32 = arith.constant 4 : i32
    %397 = arith.index_cast %c4_i32 : i32 to index
    %c0_103 = arith.constant 0 : index
    %c0_104 = arith.constant 0 : index
    %398 = vector.load %arg1[%397, %c0_103, %c0_104] : memref<8x8x96xf32, #tpu.memory_space<vmem>>, vector<1x8x96xf32>
    %399 = vector.shape_cast %398 : vector<1x8x96xf32> to vector<8x96xf32>
    %400 = arith.index_cast %c4_i32 : i32 to index
    %c0_105 = arith.constant 0 : index
    %c0_106 = arith.constant 0 : index
    %401 = vector.load %arg3[%400, %c0_105, %c0_106] : memref<8x8x1xf32, #tpu.memory_space<vmem>>, vector<1x8x1xf32>
    %402 = vector.shape_cast %401 : vector<1x8x1xf32> to vector<8x1xf32>
    %cst_107 = arith.constant dense<0.000000e+00> : vector<8x96xf32>
    %403 = tpu.matmul %341, %3, %cst_107 {dimension_numbers = #tpu.dot_dimension_numbers<[1], [0], [0], [1], [0, 0, 1, 1], [], []>} : vector<8x32xf32>, vector<32x96xf32>, vector<8x96xf32> -> vector<8x96xf32>
    %404 = vector.broadcast %5 : vector<1x96xf32> to vector<8x96xf32>
    %405 = arith.addf %403, %404 : vector<8x96xf32>
    %406 = vector.extract_strided_slice %399 {offsets = [0, 0], sizes = [8, 32], strides = [1, 1]} : vector<8x96xf32> to vector<8x32xf32>
    %407 = vector.extract_strided_slice %405 {offsets = [0, 0], sizes = [8, 32], strides = [1, 1]} : vector<8x96xf32> to vector<8x32xf32>
    %408 = arith.addf %406, %407 : vector<8x32xf32>
    %409 = arith.negf %408 : vector<8x32xf32>
    %410 = math.exp %409 : vector<8x32xf32>
    %cst_108 = arith.constant 1.000000e+00 : f32
    %411 = vector.broadcast %cst_108 : f32 to vector<8x32xf32>
    %412 = arith.addf %411, %410 : vector<8x32xf32>
    %413 = arith.divf %411, %412 : vector<8x32xf32>
    %414 = vector.extract_strided_slice %399 {offsets = [0, 32], sizes = [8, 32], strides = [1, 1]} : vector<8x96xf32> to vector<8x32xf32>
    %415 = vector.extract_strided_slice %405 {offsets = [0, 32], sizes = [8, 32], strides = [1, 1]} : vector<8x96xf32> to vector<8x32xf32>
    %416 = arith.addf %414, %415 : vector<8x32xf32>
    %417 = arith.negf %416 : vector<8x32xf32>
    %418 = math.exp %417 : vector<8x32xf32>
    %cst_109 = arith.constant 1.000000e+00 : f32
    %419 = vector.broadcast %cst_109 : f32 to vector<8x32xf32>
    %420 = arith.addf %419, %418 : vector<8x32xf32>
    %421 = arith.divf %419, %420 : vector<8x32xf32>
    %422 = vector.extract_strided_slice %399 {offsets = [0, 64], sizes = [8, 32], strides = [1, 1]} : vector<8x96xf32> to vector<8x32xf32>
    %423 = vector.extract_strided_slice %405 {offsets = [0, 64], sizes = [8, 32], strides = [1, 1]} : vector<8x96xf32> to vector<8x32xf32>
    %424 = arith.mulf %413, %423 : vector<8x32xf32>
    %425 = arith.addf %422, %424 : vector<8x32xf32>
    %426 = math.tanh %425 : vector<8x32xf32>
    %cst_110 = arith.constant 1.000000e+00 : f32
    %427 = vector.broadcast %cst_110 : f32 to vector<8x32xf32>
    %428 = arith.subf %427, %421 : vector<8x32xf32>
    %429 = arith.mulf %428, %426 : vector<8x32xf32>
    %430 = arith.mulf %421, %341 : vector<8x32xf32>
    %431 = arith.addf %429, %430 : vector<8x32xf32>
    %432 = vector.broadcast %402 : vector<8x1xf32> to vector<8x32xf32>
    %433 = arith.mulf %432, %431 : vector<8x32xf32>
    %cst_111 = arith.constant 1.000000e+00 : f32
    %434 = vector.broadcast %cst_111 : f32 to vector<8x1xf32>
    %435 = arith.subf %434, %402 : vector<8x1xf32>
    %436 = vector.broadcast %435 : vector<8x1xf32> to vector<8x32xf32>
    %437 = arith.mulf %436, %341 : vector<8x32xf32>
    %438 = arith.addf %433, %437 : vector<8x32xf32>
    %439 = vector.broadcast %402 : vector<8x1xf32> to vector<8x32xf32>
    %440 = arith.mulf %439, %431 : vector<8x32xf32>
    %441 = arith.index_cast %c4_i32 : i32 to index
    %c0_112 = arith.constant 0 : index
    %c0_113 = arith.constant 0 : index
    %442 = vector.load %arg9[%441, %c0_112, %c0_113] : memref<8x8x32xf32, #tpu.memory_space<vmem>>, vector<1x8x32xf32>
    %443 = vector.shape_cast %442 : vector<1x8x32xf32> to vector<8x32xf32>
    %444 = vector.shape_cast %440 : vector<8x32xf32> to vector<1x8x32xf32>
    tpu.vector_store %arg9[%441, %c0_112, %c0_113], %444 {strides = array<i32>} : memref<8x8x32xf32, #tpu.memory_space<vmem>>, vector<1x8x32xf32>,
    %c7_i32_114 = arith.constant 7 : i32
    %445 = arith.subi %c7_i32_114, %c4_i32 : i32
    %446 = arith.index_cast %445 : i32 to index
    %c0_115 = arith.constant 0 : index
    %c0_116 = arith.constant 0 : index
    %447 = vector.load %arg2[%446, %c0_115, %c0_116] : memref<8x8x96xf32, #tpu.memory_space<vmem>>, vector<1x8x96xf32>
    %448 = vector.shape_cast %447 : vector<1x8x96xf32> to vector<8x96xf32>
    %449 = arith.index_cast %445 : i32 to index
    %c0_117 = arith.constant 0 : index
    %c0_118 = arith.constant 0 : index
    %450 = vector.load %arg4[%449, %c0_117, %c0_118] : memref<8x8x1xf32, #tpu.memory_space<vmem>>, vector<1x8x1xf32>
    %451 = vector.shape_cast %450 : vector<1x8x1xf32> to vector<8x1xf32>
    %cst_119 = arith.constant dense<0.000000e+00> : vector<8x96xf32>
    %452 = tpu.matmul %390, %4, %cst_119 {dimension_numbers = #tpu.dot_dimension_numbers<[1], [0], [0], [1], [0, 0, 1, 1], [], []>} : vector<8x32xf32>, vector<32x96xf32>, vector<8x96xf32> -> vector<8x96xf32>
    %453 = vector.broadcast %6 : vector<1x96xf32> to vector<8x96xf32>
    %454 = arith.addf %452, %453 : vector<8x96xf32>
    %455 = vector.extract_strided_slice %448 {offsets = [0, 0], sizes = [8, 32], strides = [1, 1]} : vector<8x96xf32> to vector<8x32xf32>
    %456 = vector.extract_strided_slice %454 {offsets = [0, 0], sizes = [8, 32], strides = [1, 1]} : vector<8x96xf32> to vector<8x32xf32>
    %457 = arith.addf %455, %456 : vector<8x32xf32>
    %458 = arith.negf %457 : vector<8x32xf32>
    %459 = math.exp %458 : vector<8x32xf32>
    %cst_120 = arith.constant 1.000000e+00 : f32
    %460 = vector.broadcast %cst_120 : f32 to vector<8x32xf32>
    %461 = arith.addf %460, %459 : vector<8x32xf32>
    %462 = arith.divf %460, %461 : vector<8x32xf32>
    %463 = vector.extract_strided_slice %448 {offsets = [0, 32], sizes = [8, 32], strides = [1, 1]} : vector<8x96xf32> to vector<8x32xf32>
    %464 = vector.extract_strided_slice %454 {offsets = [0, 32], sizes = [8, 32], strides = [1, 1]} : vector<8x96xf32> to vector<8x32xf32>
    %465 = arith.addf %463, %464 : vector<8x32xf32>
    %466 = arith.negf %465 : vector<8x32xf32>
    %467 = math.exp %466 : vector<8x32xf32>
    %cst_121 = arith.constant 1.000000e+00 : f32
    %468 = vector.broadcast %cst_121 : f32 to vector<8x32xf32>
    %469 = arith.addf %468, %467 : vector<8x32xf32>
    %470 = arith.divf %468, %469 : vector<8x32xf32>
    %471 = vector.extract_strided_slice %448 {offsets = [0, 64], sizes = [8, 32], strides = [1, 1]} : vector<8x96xf32> to vector<8x32xf32>
    %472 = vector.extract_strided_slice %454 {offsets = [0, 64], sizes = [8, 32], strides = [1, 1]} : vector<8x96xf32> to vector<8x32xf32>
    %473 = arith.mulf %462, %472 : vector<8x32xf32>
    %474 = arith.addf %471, %473 : vector<8x32xf32>
    %475 = math.tanh %474 : vector<8x32xf32>
    %cst_122 = arith.constant 1.000000e+00 : f32
    %476 = vector.broadcast %cst_122 : f32 to vector<8x32xf32>
    %477 = arith.subf %476, %470 : vector<8x32xf32>
    %478 = arith.mulf %477, %475 : vector<8x32xf32>
    %479 = arith.mulf %470, %390 : vector<8x32xf32>
    %480 = arith.addf %478, %479 : vector<8x32xf32>
    %481 = vector.broadcast %451 : vector<8x1xf32> to vector<8x32xf32>
    %482 = arith.mulf %481, %480 : vector<8x32xf32>
    %cst_123 = arith.constant 1.000000e+00 : f32
    %483 = vector.broadcast %cst_123 : f32 to vector<8x1xf32>
    %484 = arith.subf %483, %451 : vector<8x1xf32>
    %485 = vector.broadcast %484 : vector<8x1xf32> to vector<8x32xf32>
    %486 = arith.mulf %485, %390 : vector<8x32xf32>
    %487 = arith.addf %482, %486 : vector<8x32xf32>
    %488 = vector.broadcast %451 : vector<8x1xf32> to vector<8x32xf32>
    %489 = arith.mulf %488, %480 : vector<8x32xf32>
    %490 = arith.index_cast %445 : i32 to index
    %c0_124 = arith.constant 0 : index
    %c0_125 = arith.constant 0 : index
    %491 = vector.load %arg10[%490, %c0_124, %c0_125] : memref<8x8x32xf32, #tpu.memory_space<vmem>>, vector<1x8x32xf32>
    %492 = vector.shape_cast %491 : vector<1x8x32xf32> to vector<8x32xf32>
    %493 = vector.shape_cast %489 : vector<8x32xf32> to vector<1x8x32xf32>
    tpu.vector_store %arg10[%490, %c0_124, %c0_125], %493 {strides = array<i32>} : memref<8x8x32xf32, #tpu.memory_space<vmem>>, vector<1x8x32xf32>,
    %c5_i32 = arith.constant 5 : i32
    %494 = arith.index_cast %c5_i32 : i32 to index
    %c0_126 = arith.constant 0 : index
    %c0_127 = arith.constant 0 : index
    %495 = vector.load %arg1[%494, %c0_126, %c0_127] : memref<8x8x96xf32, #tpu.memory_space<vmem>>, vector<1x8x96xf32>
    %496 = vector.shape_cast %495 : vector<1x8x96xf32> to vector<8x96xf32>
    %497 = arith.index_cast %c5_i32 : i32 to index
    %c0_128 = arith.constant 0 : index
    %c0_129 = arith.constant 0 : index
    %498 = vector.load %arg3[%497, %c0_128, %c0_129] : memref<8x8x1xf32, #tpu.memory_space<vmem>>, vector<1x8x1xf32>
    %499 = vector.shape_cast %498 : vector<1x8x1xf32> to vector<8x1xf32>
    %cst_130 = arith.constant dense<0.000000e+00> : vector<8x96xf32>
    %500 = tpu.matmul %438, %3, %cst_130 {dimension_numbers = #tpu.dot_dimension_numbers<[1], [0], [0], [1], [0, 0, 1, 1], [], []>} : vector<8x32xf32>, vector<32x96xf32>, vector<8x96xf32> -> vector<8x96xf32>
    %501 = vector.broadcast %5 : vector<1x96xf32> to vector<8x96xf32>
    %502 = arith.addf %500, %501 : vector<8x96xf32>
    %503 = vector.extract_strided_slice %496 {offsets = [0, 0], sizes = [8, 32], strides = [1, 1]} : vector<8x96xf32> to vector<8x32xf32>
    %504 = vector.extract_strided_slice %502 {offsets = [0, 0], sizes = [8, 32], strides = [1, 1]} : vector<8x96xf32> to vector<8x32xf32>
    %505 = arith.addf %503, %504 : vector<8x32xf32>
    %506 = arith.negf %505 : vector<8x32xf32>
    %507 = math.exp %506 : vector<8x32xf32>
    %cst_131 = arith.constant 1.000000e+00 : f32
    %508 = vector.broadcast %cst_131 : f32 to vector<8x32xf32>
    %509 = arith.addf %508, %507 : vector<8x32xf32>
    %510 = arith.divf %508, %509 : vector<8x32xf32>
    %511 = vector.extract_strided_slice %496 {offsets = [0, 32], sizes = [8, 32], strides = [1, 1]} : vector<8x96xf32> to vector<8x32xf32>
    %512 = vector.extract_strided_slice %502 {offsets = [0, 32], sizes = [8, 32], strides = [1, 1]} : vector<8x96xf32> to vector<8x32xf32>
    %513 = arith.addf %511, %512 : vector<8x32xf32>
    %514 = arith.negf %513 : vector<8x32xf32>
    %515 = math.exp %514 : vector<8x32xf32>
    %cst_132 = arith.constant 1.000000e+00 : f32
    %516 = vector.broadcast %cst_132 : f32 to vector<8x32xf32>
    %517 = arith.addf %516, %515 : vector<8x32xf32>
    %518 = arith.divf %516, %517 : vector<8x32xf32>
    %519 = vector.extract_strided_slice %496 {offsets = [0, 64], sizes = [8, 32], strides = [1, 1]} : vector<8x96xf32> to vector<8x32xf32>
    %520 = vector.extract_strided_slice %502 {offsets = [0, 64], sizes = [8, 32], strides = [1, 1]} : vector<8x96xf32> to vector<8x32xf32>
    %521 = arith.mulf %510, %520 : vector<8x32xf32>
    %522 = arith.addf %519, %521 : vector<8x32xf32>
    %523 = math.tanh %522 : vector<8x32xf32>
    %cst_133 = arith.constant 1.000000e+00 : f32
    %524 = vector.broadcast %cst_133 : f32 to vector<8x32xf32>
    %525 = arith.subf %524, %518 : vector<8x32xf32>
    %526 = arith.mulf %525, %523 : vector<8x32xf32>
    %527 = arith.mulf %518, %438 : vector<8x32xf32>
    %528 = arith.addf %526, %527 : vector<8x32xf32>
    %529 = vector.broadcast %499 : vector<8x1xf32> to vector<8x32xf32>
    %530 = arith.mulf %529, %528 : vector<8x32xf32>
    %cst_134 = arith.constant 1.000000e+00 : f32
    %531 = vector.broadcast %cst_134 : f32 to vector<8x1xf32>
    %532 = arith.subf %531, %499 : vector<8x1xf32>
    %533 = vector.broadcast %532 : vector<8x1xf32> to vector<8x32xf32>
    %534 = arith.mulf %533, %438 : vector<8x32xf32>
    %535 = arith.addf %530, %534 : vector<8x32xf32>
    %536 = vector.broadcast %499 : vector<8x1xf32> to vector<8x32xf32>
    %537 = arith.mulf %536, %528 : vector<8x32xf32>
    %538 = arith.index_cast %c5_i32 : i32 to index
    %c0_135 = arith.constant 0 : index
    %c0_136 = arith.constant 0 : index
    %539 = vector.load %arg9[%538, %c0_135, %c0_136] : memref<8x8x32xf32, #tpu.memory_space<vmem>>, vector<1x8x32xf32>
    %540 = vector.shape_cast %539 : vector<1x8x32xf32> to vector<8x32xf32>
    %541 = vector.shape_cast %537 : vector<8x32xf32> to vector<1x8x32xf32>
    tpu.vector_store %arg9[%538, %c0_135, %c0_136], %541 {strides = array<i32>} : memref<8x8x32xf32, #tpu.memory_space<vmem>>, vector<1x8x32xf32>,
    %c7_i32_137 = arith.constant 7 : i32
    %542 = arith.subi %c7_i32_137, %c5_i32 : i32
    %543 = arith.index_cast %542 : i32 to index
    %c0_138 = arith.constant 0 : index
    %c0_139 = arith.constant 0 : index
    %544 = vector.load %arg2[%543, %c0_138, %c0_139] : memref<8x8x96xf32, #tpu.memory_space<vmem>>, vector<1x8x96xf32>
    %545 = vector.shape_cast %544 : vector<1x8x96xf32> to vector<8x96xf32>
    %546 = arith.index_cast %542 : i32 to index
    %c0_140 = arith.constant 0 : index
    %c0_141 = arith.constant 0 : index
    %547 = vector.load %arg4[%546, %c0_140, %c0_141] : memref<8x8x1xf32, #tpu.memory_space<vmem>>, vector<1x8x1xf32>
    %548 = vector.shape_cast %547 : vector<1x8x1xf32> to vector<8x1xf32>
    %cst_142 = arith.constant dense<0.000000e+00> : vector<8x96xf32>
    %549 = tpu.matmul %487, %4, %cst_142 {dimension_numbers = #tpu.dot_dimension_numbers<[1], [0], [0], [1], [0, 0, 1, 1], [], []>} : vector<8x32xf32>, vector<32x96xf32>, vector<8x96xf32> -> vector<8x96xf32>
    %550 = vector.broadcast %6 : vector<1x96xf32> to vector<8x96xf32>
    %551 = arith.addf %549, %550 : vector<8x96xf32>
    %552 = vector.extract_strided_slice %545 {offsets = [0, 0], sizes = [8, 32], strides = [1, 1]} : vector<8x96xf32> to vector<8x32xf32>
    %553 = vector.extract_strided_slice %551 {offsets = [0, 0], sizes = [8, 32], strides = [1, 1]} : vector<8x96xf32> to vector<8x32xf32>
    %554 = arith.addf %552, %553 : vector<8x32xf32>
    %555 = arith.negf %554 : vector<8x32xf32>
    %556 = math.exp %555 : vector<8x32xf32>
    %cst_143 = arith.constant 1.000000e+00 : f32
    %557 = vector.broadcast %cst_143 : f32 to vector<8x32xf32>
    %558 = arith.addf %557, %556 : vector<8x32xf32>
    %559 = arith.divf %557, %558 : vector<8x32xf32>
    %560 = vector.extract_strided_slice %545 {offsets = [0, 32], sizes = [8, 32], strides = [1, 1]} : vector<8x96xf32> to vector<8x32xf32>
    %561 = vector.extract_strided_slice %551 {offsets = [0, 32], sizes = [8, 32], strides = [1, 1]} : vector<8x96xf32> to vector<8x32xf32>
    %562 = arith.addf %560, %561 : vector<8x32xf32>
    %563 = arith.negf %562 : vector<8x32xf32>
    %564 = math.exp %563 : vector<8x32xf32>
    %cst_144 = arith.constant 1.000000e+00 : f32
    %565 = vector.broadcast %cst_144 : f32 to vector<8x32xf32>
    %566 = arith.addf %565, %564 : vector<8x32xf32>
    %567 = arith.divf %565, %566 : vector<8x32xf32>
    %568 = vector.extract_strided_slice %545 {offsets = [0, 64], sizes = [8, 32], strides = [1, 1]} : vector<8x96xf32> to vector<8x32xf32>
    %569 = vector.extract_strided_slice %551 {offsets = [0, 64], sizes = [8, 32], strides = [1, 1]} : vector<8x96xf32> to vector<8x32xf32>
    %570 = arith.mulf %559, %569 : vector<8x32xf32>
    %571 = arith.addf %568, %570 : vector<8x32xf32>
    %572 = math.tanh %571 : vector<8x32xf32>
    %cst_145 = arith.constant 1.000000e+00 : f32
    %573 = vector.broadcast %cst_145 : f32 to vector<8x32xf32>
    %574 = arith.subf %573, %567 : vector<8x32xf32>
    %575 = arith.mulf %574, %572 : vector<8x32xf32>
    %576 = arith.mulf %567, %487 : vector<8x32xf32>
    %577 = arith.addf %575, %576 : vector<8x32xf32>
    %578 = vector.broadcast %548 : vector<8x1xf32> to vector<8x32xf32>
    %579 = arith.mulf %578, %577 : vector<8x32xf32>
    %cst_146 = arith.constant 1.000000e+00 : f32
    %580 = vector.broadcast %cst_146 : f32 to vector<8x1xf32>
    %581 = arith.subf %580, %548 : vector<8x1xf32>
    %582 = vector.broadcast %581 : vector<8x1xf32> to vector<8x32xf32>
    %583 = arith.mulf %582, %487 : vector<8x32xf32>
    %584 = arith.addf %579, %583 : vector<8x32xf32>
    %585 = vector.broadcast %548 : vector<8x1xf32> to vector<8x32xf32>
    %586 = arith.mulf %585, %577 : vector<8x32xf32>
    %587 = arith.index_cast %542 : i32 to index
    %c0_147 = arith.constant 0 : index
    %c0_148 = arith.constant 0 : index
    %588 = vector.load %arg10[%587, %c0_147, %c0_148] : memref<8x8x32xf32, #tpu.memory_space<vmem>>, vector<1x8x32xf32>
    %589 = vector.shape_cast %588 : vector<1x8x32xf32> to vector<8x32xf32>
    %590 = vector.shape_cast %586 : vector<8x32xf32> to vector<1x8x32xf32>
    tpu.vector_store %arg10[%587, %c0_147, %c0_148], %590 {strides = array<i32>} : memref<8x8x32xf32, #tpu.memory_space<vmem>>, vector<1x8x32xf32>,
    %c6_i32 = arith.constant 6 : i32
    %591 = arith.index_cast %c6_i32 : i32 to index
    %c0_149 = arith.constant 0 : index
    %c0_150 = arith.constant 0 : index
    %592 = vector.load %arg1[%591, %c0_149, %c0_150] : memref<8x8x96xf32, #tpu.memory_space<vmem>>, vector<1x8x96xf32>
    %593 = vector.shape_cast %592 : vector<1x8x96xf32> to vector<8x96xf32>
    %594 = arith.index_cast %c6_i32 : i32 to index
    %c0_151 = arith.constant 0 : index
    %c0_152 = arith.constant 0 : index
    %595 = vector.load %arg3[%594, %c0_151, %c0_152] : memref<8x8x1xf32, #tpu.memory_space<vmem>>, vector<1x8x1xf32>
    %596 = vector.shape_cast %595 : vector<1x8x1xf32> to vector<8x1xf32>
    %cst_153 = arith.constant dense<0.000000e+00> : vector<8x96xf32>
    %597 = tpu.matmul %535, %3, %cst_153 {dimension_numbers = #tpu.dot_dimension_numbers<[1], [0], [0], [1], [0, 0, 1, 1], [], []>} : vector<8x32xf32>, vector<32x96xf32>, vector<8x96xf32> -> vector<8x96xf32>
    %598 = vector.broadcast %5 : vector<1x96xf32> to vector<8x96xf32>
    %599 = arith.addf %597, %598 : vector<8x96xf32>
    %600 = vector.extract_strided_slice %593 {offsets = [0, 0], sizes = [8, 32], strides = [1, 1]} : vector<8x96xf32> to vector<8x32xf32>
    %601 = vector.extract_strided_slice %599 {offsets = [0, 0], sizes = [8, 32], strides = [1, 1]} : vector<8x96xf32> to vector<8x32xf32>
    %602 = arith.addf %600, %601 : vector<8x32xf32>
    %603 = arith.negf %602 : vector<8x32xf32>
    %604 = math.exp %603 : vector<8x32xf32>
    %cst_154 = arith.constant 1.000000e+00 : f32
    %605 = vector.broadcast %cst_154 : f32 to vector<8x32xf32>
    %606 = arith.addf %605, %604 : vector<8x32xf32>
    %607 = arith.divf %605, %606 : vector<8x32xf32>
    %608 = vector.extract_strided_slice %593 {offsets = [0, 32], sizes = [8, 32], strides = [1, 1]} : vector<8x96xf32> to vector<8x32xf32>
    %609 = vector.extract_strided_slice %599 {offsets = [0, 32], sizes = [8, 32], strides = [1, 1]} : vector<8x96xf32> to vector<8x32xf32>
    %610 = arith.addf %608, %609 : vector<8x32xf32>
    %611 = arith.negf %610 : vector<8x32xf32>
    %612 = math.exp %611 : vector<8x32xf32>
    %cst_155 = arith.constant 1.000000e+00 : f32
    %613 = vector.broadcast %cst_155 : f32 to vector<8x32xf32>
    %614 = arith.addf %613, %612 : vector<8x32xf32>
    %615 = arith.divf %613, %614 : vector<8x32xf32>
    %616 = vector.extract_strided_slice %593 {offsets = [0, 64], sizes = [8, 32], strides = [1, 1]} : vector<8x96xf32> to vector<8x32xf32>
    %617 = vector.extract_strided_slice %599 {offsets = [0, 64], sizes = [8, 32], strides = [1, 1]} : vector<8x96xf32> to vector<8x32xf32>
    %618 = arith.mulf %607, %617 : vector<8x32xf32>
    %619 = arith.addf %616, %618 : vector<8x32xf32>
    %620 = math.tanh %619 : vector<8x32xf32>
    %cst_156 = arith.constant 1.000000e+00 : f32
    %621 = vector.broadcast %cst_156 : f32 to vector<8x32xf32>
    %622 = arith.subf %621, %615 : vector<8x32xf32>
    %623 = arith.mulf %622, %620 : vector<8x32xf32>
    %624 = arith.mulf %615, %535 : vector<8x32xf32>
    %625 = arith.addf %623, %624 : vector<8x32xf32>
    %626 = vector.broadcast %596 : vector<8x1xf32> to vector<8x32xf32>
    %627 = arith.mulf %626, %625 : vector<8x32xf32>
    %cst_157 = arith.constant 1.000000e+00 : f32
    %628 = vector.broadcast %cst_157 : f32 to vector<8x1xf32>
    %629 = arith.subf %628, %596 : vector<8x1xf32>
    %630 = vector.broadcast %629 : vector<8x1xf32> to vector<8x32xf32>
    %631 = arith.mulf %630, %535 : vector<8x32xf32>
    %632 = arith.addf %627, %631 : vector<8x32xf32>
    %633 = vector.broadcast %596 : vector<8x1xf32> to vector<8x32xf32>
    %634 = arith.mulf %633, %625 : vector<8x32xf32>
    %635 = arith.index_cast %c6_i32 : i32 to index
    %c0_158 = arith.constant 0 : index
    %c0_159 = arith.constant 0 : index
    %636 = vector.load %arg9[%635, %c0_158, %c0_159] : memref<8x8x32xf32, #tpu.memory_space<vmem>>, vector<1x8x32xf32>
    %637 = vector.shape_cast %636 : vector<1x8x32xf32> to vector<8x32xf32>
    %638 = vector.shape_cast %634 : vector<8x32xf32> to vector<1x8x32xf32>
    tpu.vector_store %arg9[%635, %c0_158, %c0_159], %638 {strides = array<i32>} : memref<8x8x32xf32, #tpu.memory_space<vmem>>, vector<1x8x32xf32>,
    %c7_i32_160 = arith.constant 7 : i32
    %639 = arith.subi %c7_i32_160, %c6_i32 : i32
    %640 = arith.index_cast %639 : i32 to index
    %c0_161 = arith.constant 0 : index
    %c0_162 = arith.constant 0 : index
    %641 = vector.load %arg2[%640, %c0_161, %c0_162] : memref<8x8x96xf32, #tpu.memory_space<vmem>>, vector<1x8x96xf32>
    %642 = vector.shape_cast %641 : vector<1x8x96xf32> to vector<8x96xf32>
    %643 = arith.index_cast %639 : i32 to index
    %c0_163 = arith.constant 0 : index
    %c0_164 = arith.constant 0 : index
    %644 = vector.load %arg4[%643, %c0_163, %c0_164] : memref<8x8x1xf32, #tpu.memory_space<vmem>>, vector<1x8x1xf32>
    %645 = vector.shape_cast %644 : vector<1x8x1xf32> to vector<8x1xf32>
    %cst_165 = arith.constant dense<0.000000e+00> : vector<8x96xf32>
    %646 = tpu.matmul %584, %4, %cst_165 {dimension_numbers = #tpu.dot_dimension_numbers<[1], [0], [0], [1], [0, 0, 1, 1], [], []>} : vector<8x32xf32>, vector<32x96xf32>, vector<8x96xf32> -> vector<8x96xf32>
    %647 = vector.broadcast %6 : vector<1x96xf32> to vector<8x96xf32>
    %648 = arith.addf %646, %647 : vector<8x96xf32>
    %649 = vector.extract_strided_slice %642 {offsets = [0, 0], sizes = [8, 32], strides = [1, 1]} : vector<8x96xf32> to vector<8x32xf32>
    %650 = vector.extract_strided_slice %648 {offsets = [0, 0], sizes = [8, 32], strides = [1, 1]} : vector<8x96xf32> to vector<8x32xf32>
    %651 = arith.addf %649, %650 : vector<8x32xf32>
    %652 = arith.negf %651 : vector<8x32xf32>
    %653 = math.exp %652 : vector<8x32xf32>
    %cst_166 = arith.constant 1.000000e+00 : f32
    %654 = vector.broadcast %cst_166 : f32 to vector<8x32xf32>
    %655 = arith.addf %654, %653 : vector<8x32xf32>
    %656 = arith.divf %654, %655 : vector<8x32xf32>
    %657 = vector.extract_strided_slice %642 {offsets = [0, 32], sizes = [8, 32], strides = [1, 1]} : vector<8x96xf32> to vector<8x32xf32>
    %658 = vector.extract_strided_slice %648 {offsets = [0, 32], sizes = [8, 32], strides = [1, 1]} : vector<8x96xf32> to vector<8x32xf32>
    %659 = arith.addf %657, %658 : vector<8x32xf32>
    %660 = arith.negf %659 : vector<8x32xf32>
    %661 = math.exp %660 : vector<8x32xf32>
    %cst_167 = arith.constant 1.000000e+00 : f32
    %662 = vector.broadcast %cst_167 : f32 to vector<8x32xf32>
    %663 = arith.addf %662, %661 : vector<8x32xf32>
    %664 = arith.divf %662, %663 : vector<8x32xf32>
    %665 = vector.extract_strided_slice %642 {offsets = [0, 64], sizes = [8, 32], strides = [1, 1]} : vector<8x96xf32> to vector<8x32xf32>
    %666 = vector.extract_strided_slice %648 {offsets = [0, 64], sizes = [8, 32], strides = [1, 1]} : vector<8x96xf32> to vector<8x32xf32>
    %667 = arith.mulf %656, %666 : vector<8x32xf32>
    %668 = arith.addf %665, %667 : vector<8x32xf32>
    %669 = math.tanh %668 : vector<8x32xf32>
    %cst_168 = arith.constant 1.000000e+00 : f32
    %670 = vector.broadcast %cst_168 : f32 to vector<8x32xf32>
    %671 = arith.subf %670, %664 : vector<8x32xf32>
    %672 = arith.mulf %671, %669 : vector<8x32xf32>
    %673 = arith.mulf %664, %584 : vector<8x32xf32>
    %674 = arith.addf %672, %673 : vector<8x32xf32>
    %675 = vector.broadcast %645 : vector<8x1xf32> to vector<8x32xf32>
    %676 = arith.mulf %675, %674 : vector<8x32xf32>
    %cst_169 = arith.constant 1.000000e+00 : f32
    %677 = vector.broadcast %cst_169 : f32 to vector<8x1xf32>
    %678 = arith.subf %677, %645 : vector<8x1xf32>
    %679 = vector.broadcast %678 : vector<8x1xf32> to vector<8x32xf32>
    %680 = arith.mulf %679, %584 : vector<8x32xf32>
    %681 = arith.addf %676, %680 : vector<8x32xf32>
    %682 = vector.broadcast %645 : vector<8x1xf32> to vector<8x32xf32>
    %683 = arith.mulf %682, %674 : vector<8x32xf32>
    %684 = arith.index_cast %639 : i32 to index
    %c0_170 = arith.constant 0 : index
    %c0_171 = arith.constant 0 : index
    %685 = vector.load %arg10[%684, %c0_170, %c0_171] : memref<8x8x32xf32, #tpu.memory_space<vmem>>, vector<1x8x32xf32>
    %686 = vector.shape_cast %685 : vector<1x8x32xf32> to vector<8x32xf32>
    %687 = vector.shape_cast %683 : vector<8x32xf32> to vector<1x8x32xf32>
    tpu.vector_store %arg10[%684, %c0_170, %c0_171], %687 {strides = array<i32>} : memref<8x8x32xf32, #tpu.memory_space<vmem>>, vector<1x8x32xf32>,
    %c7_i32_172 = arith.constant 7 : i32
    %688 = arith.index_cast %c7_i32_172 : i32 to index
    %c0_173 = arith.constant 0 : index
    %c0_174 = arith.constant 0 : index
    %689 = vector.load %arg1[%688, %c0_173, %c0_174] : memref<8x8x96xf32, #tpu.memory_space<vmem>>, vector<1x8x96xf32>
    %690 = vector.shape_cast %689 : vector<1x8x96xf32> to vector<8x96xf32>
    %691 = arith.index_cast %c7_i32_172 : i32 to index
    %c0_175 = arith.constant 0 : index
    %c0_176 = arith.constant 0 : index
    %692 = vector.load %arg3[%691, %c0_175, %c0_176] : memref<8x8x1xf32, #tpu.memory_space<vmem>>, vector<1x8x1xf32>
    %693 = vector.shape_cast %692 : vector<1x8x1xf32> to vector<8x1xf32>
    %cst_177 = arith.constant dense<0.000000e+00> : vector<8x96xf32>
    %694 = tpu.matmul %632, %3, %cst_177 {dimension_numbers = #tpu.dot_dimension_numbers<[1], [0], [0], [1], [0, 0, 1, 1], [], []>} : vector<8x32xf32>, vector<32x96xf32>, vector<8x96xf32> -> vector<8x96xf32>
    %695 = vector.broadcast %5 : vector<1x96xf32> to vector<8x96xf32>
    %696 = arith.addf %694, %695 : vector<8x96xf32>
    %697 = vector.extract_strided_slice %690 {offsets = [0, 0], sizes = [8, 32], strides = [1, 1]} : vector<8x96xf32> to vector<8x32xf32>
    %698 = vector.extract_strided_slice %696 {offsets = [0, 0], sizes = [8, 32], strides = [1, 1]} : vector<8x96xf32> to vector<8x32xf32>
    %699 = arith.addf %697, %698 : vector<8x32xf32>
    %700 = arith.negf %699 : vector<8x32xf32>
    %701 = math.exp %700 : vector<8x32xf32>
    %cst_178 = arith.constant 1.000000e+00 : f32
    %702 = vector.broadcast %cst_178 : f32 to vector<8x32xf32>
    %703 = arith.addf %702, %701 : vector<8x32xf32>
    %704 = arith.divf %702, %703 : vector<8x32xf32>
    %705 = vector.extract_strided_slice %690 {offsets = [0, 32], sizes = [8, 32], strides = [1, 1]} : vector<8x96xf32> to vector<8x32xf32>
    %706 = vector.extract_strided_slice %696 {offsets = [0, 32], sizes = [8, 32], strides = [1, 1]} : vector<8x96xf32> to vector<8x32xf32>
    %707 = arith.addf %705, %706 : vector<8x32xf32>
    %708 = arith.negf %707 : vector<8x32xf32>
    %709 = math.exp %708 : vector<8x32xf32>
    %cst_179 = arith.constant 1.000000e+00 : f32
    %710 = vector.broadcast %cst_179 : f32 to vector<8x32xf32>
    %711 = arith.addf %710, %709 : vector<8x32xf32>
    %712 = arith.divf %710, %711 : vector<8x32xf32>
    %713 = vector.extract_strided_slice %690 {offsets = [0, 64], sizes = [8, 32], strides = [1, 1]} : vector<8x96xf32> to vector<8x32xf32>
    %714 = vector.extract_strided_slice %696 {offsets = [0, 64], sizes = [8, 32], strides = [1, 1]} : vector<8x96xf32> to vector<8x32xf32>
    %715 = arith.mulf %704, %714 : vector<8x32xf32>
    %716 = arith.addf %713, %715 : vector<8x32xf32>
    %717 = math.tanh %716 : vector<8x32xf32>
    %cst_180 = arith.constant 1.000000e+00 : f32
    %718 = vector.broadcast %cst_180 : f32 to vector<8x32xf32>
    %719 = arith.subf %718, %712 : vector<8x32xf32>
    %720 = arith.mulf %719, %717 : vector<8x32xf32>
    %721 = arith.mulf %712, %632 : vector<8x32xf32>
    %722 = arith.addf %720, %721 : vector<8x32xf32>
    %723 = vector.broadcast %693 : vector<8x1xf32> to vector<8x32xf32>
    %724 = arith.mulf %723, %722 : vector<8x32xf32>
    %cst_181 = arith.constant 1.000000e+00 : f32
    %725 = vector.broadcast %cst_181 : f32 to vector<8x1xf32>
    %726 = arith.subf %725, %693 : vector<8x1xf32>
    %727 = vector.broadcast %726 : vector<8x1xf32> to vector<8x32xf32>
    %728 = arith.mulf %727, %632 : vector<8x32xf32>
    %729 = arith.addf %724, %728 : vector<8x32xf32>
    %730 = vector.broadcast %693 : vector<8x1xf32> to vector<8x32xf32>
    %731 = arith.mulf %730, %722 : vector<8x32xf32>
    %732 = arith.index_cast %c7_i32_172 : i32 to index
    %c0_182 = arith.constant 0 : index
    %c0_183 = arith.constant 0 : index
    %733 = vector.load %arg9[%732, %c0_182, %c0_183] : memref<8x8x32xf32, #tpu.memory_space<vmem>>, vector<1x8x32xf32>
    %734 = vector.shape_cast %733 : vector<1x8x32xf32> to vector<8x32xf32>
    %735 = vector.shape_cast %731 : vector<8x32xf32> to vector<1x8x32xf32>
    tpu.vector_store %arg9[%732, %c0_182, %c0_183], %735 {strides = array<i32>} : memref<8x8x32xf32, #tpu.memory_space<vmem>>, vector<1x8x32xf32>,
    %c7_i32_184 = arith.constant 7 : i32
    %736 = arith.subi %c7_i32_184, %c7_i32_172 : i32
    %737 = arith.index_cast %736 : i32 to index
    %c0_185 = arith.constant 0 : index
    %c0_186 = arith.constant 0 : index
    %738 = vector.load %arg2[%737, %c0_185, %c0_186] : memref<8x8x96xf32, #tpu.memory_space<vmem>>, vector<1x8x96xf32>
    %739 = vector.shape_cast %738 : vector<1x8x96xf32> to vector<8x96xf32>
    %740 = arith.index_cast %736 : i32 to index
    %c0_187 = arith.constant 0 : index
    %c0_188 = arith.constant 0 : index
    %741 = vector.load %arg4[%740, %c0_187, %c0_188] : memref<8x8x1xf32, #tpu.memory_space<vmem>>, vector<1x8x1xf32>
    %742 = vector.shape_cast %741 : vector<1x8x1xf32> to vector<8x1xf32>
    %cst_189 = arith.constant dense<0.000000e+00> : vector<8x96xf32>
    %743 = tpu.matmul %681, %4, %cst_189 {dimension_numbers = #tpu.dot_dimension_numbers<[1], [0], [0], [1], [0, 0, 1, 1], [], []>} : vector<8x32xf32>, vector<32x96xf32>, vector<8x96xf32> -> vector<8x96xf32>
    %744 = vector.broadcast %6 : vector<1x96xf32> to vector<8x96xf32>
    %745 = arith.addf %743, %744 : vector<8x96xf32>
    %746 = vector.extract_strided_slice %739 {offsets = [0, 0], sizes = [8, 32], strides = [1, 1]} : vector<8x96xf32> to vector<8x32xf32>
    %747 = vector.extract_strided_slice %745 {offsets = [0, 0], sizes = [8, 32], strides = [1, 1]} : vector<8x96xf32> to vector<8x32xf32>
    %748 = arith.addf %746, %747 : vector<8x32xf32>
    %749 = arith.negf %748 : vector<8x32xf32>
    %750 = math.exp %749 : vector<8x32xf32>
    %cst_190 = arith.constant 1.000000e+00 : f32
    %751 = vector.broadcast %cst_190 : f32 to vector<8x32xf32>
    %752 = arith.addf %751, %750 : vector<8x32xf32>
    %753 = arith.divf %751, %752 : vector<8x32xf32>
    %754 = vector.extract_strided_slice %739 {offsets = [0, 32], sizes = [8, 32], strides = [1, 1]} : vector<8x96xf32> to vector<8x32xf32>
    %755 = vector.extract_strided_slice %745 {offsets = [0, 32], sizes = [8, 32], strides = [1, 1]} : vector<8x96xf32> to vector<8x32xf32>
    %756 = arith.addf %754, %755 : vector<8x32xf32>
    %757 = arith.negf %756 : vector<8x32xf32>
    %758 = math.exp %757 : vector<8x32xf32>
    %cst_191 = arith.constant 1.000000e+00 : f32
    %759 = vector.broadcast %cst_191 : f32 to vector<8x32xf32>
    %760 = arith.addf %759, %758 : vector<8x32xf32>
    %761 = arith.divf %759, %760 : vector<8x32xf32>
    %762 = vector.extract_strided_slice %739 {offsets = [0, 64], sizes = [8, 32], strides = [1, 1]} : vector<8x96xf32> to vector<8x32xf32>
    %763 = vector.extract_strided_slice %745 {offsets = [0, 64], sizes = [8, 32], strides = [1, 1]} : vector<8x96xf32> to vector<8x32xf32>
    %764 = arith.mulf %753, %763 : vector<8x32xf32>
    %765 = arith.addf %762, %764 : vector<8x32xf32>
    %766 = math.tanh %765 : vector<8x32xf32>
    %cst_192 = arith.constant 1.000000e+00 : f32
    %767 = vector.broadcast %cst_192 : f32 to vector<8x32xf32>
    %768 = arith.subf %767, %761 : vector<8x32xf32>
    %769 = arith.mulf %768, %766 : vector<8x32xf32>
    %770 = arith.mulf %761, %681 : vector<8x32xf32>
    %771 = arith.addf %769, %770 : vector<8x32xf32>
    %772 = vector.broadcast %742 : vector<8x1xf32> to vector<8x32xf32>
    %773 = arith.mulf %772, %771 : vector<8x32xf32>
    %cst_193 = arith.constant 1.000000e+00 : f32
    %774 = vector.broadcast %cst_193 : f32 to vector<8x1xf32>
    %775 = arith.subf %774, %742 : vector<8x1xf32>
    %776 = vector.broadcast %775 : vector<8x1xf32> to vector<8x32xf32>
    %777 = arith.mulf %776, %681 : vector<8x32xf32>
    %778 = arith.addf %773, %777 : vector<8x32xf32>
    %779 = vector.broadcast %742 : vector<8x1xf32> to vector<8x32xf32>
    %780 = arith.mulf %779, %771 : vector<8x32xf32>
    %781 = arith.index_cast %736 : i32 to index
    %c0_194 = arith.constant 0 : index
    %c0_195 = arith.constant 0 : index
    %782 = vector.load %arg10[%781, %c0_194, %c0_195] : memref<8x8x32xf32, #tpu.memory_space<vmem>>, vector<1x8x32xf32>
    %783 = vector.shape_cast %782 : vector<1x8x32xf32> to vector<8x32xf32>
    %784 = vector.shape_cast %780 : vector<8x32xf32> to vector<1x8x32xf32>
    tpu.vector_store %arg10[%781, %c0_194, %c0_195], %784 {strides = array<i32>} : memref<8x8x32xf32, #tpu.memory_space<vmem>>, vector<1x8x32xf32>,
    %c8_i32 = arith.constant 8 : i32
    %c0_196 = arith.constant 0 : index
    %c0_197 = arith.constant 0 : index
    %785 = vector.load %arg13[%c0_196, %c0_197] : memref<8x32xf32, #tpu.memory_space<vmem>>, vector<8x32xf32>
    tpu.vector_store %arg13[%c0_196, %c0_197], %729 {strides = array<i32>} : memref<8x32xf32, #tpu.memory_space<vmem>>, vector<8x32xf32>,
    %c0_198 = arith.constant 0 : index
    %c0_199 = arith.constant 0 : index
    %786 = vector.load %arg14[%c0_198, %c0_199] : memref<8x32xf32, #tpu.memory_space<vmem>>, vector<8x32xf32>
    tpu.vector_store %arg14[%c0_198, %c0_199], %778 {strides = array<i32>} : memref<8x32xf32, #tpu.memory_space<vmem>>, vector<8x32xf32>,
    %c0_i32_200 = arith.constant 0 : i32
    %787 = arith.cmpi eq, %arg0, %c0_i32_200 : i32
    %788 = arith.extui %787 : i1 to i32
    %c0_i32_201 = arith.constant 0 : i32
    %789 = arith.cmpi ne, %788, %c0_i32_201 : i32
    scf.if %789 {
      %c0_202 = arith.constant 0 : index
      %c0_203 = arith.constant 0 : index
      %790 = vector.load %arg11[%c0_202, %c0_203] : memref<8x32xf32, #tpu.memory_space<vmem>>, vector<8x32xf32>
      tpu.vector_store %arg11[%c0_202, %c0_203], %729 {strides = array<i32>} : memref<8x32xf32, #tpu.memory_space<vmem>>, vector<8x32xf32>,
      %c0_204 = arith.constant 0 : index
      %c0_205 = arith.constant 0 : index
      %791 = vector.load %arg12[%c0_204, %c0_205] : memref<8x32xf32, #tpu.memory_space<vmem>>, vector<8x32xf32>
      tpu.vector_store %arg12[%c0_204, %c0_205], %778 {strides = array<i32>} : memref<8x32xf32, #tpu.memory_space<vmem>>, vector<8x32xf32>,
    } else {
    }
    return
  }
  func.func @transform_0(%arg0: i32) -> (i32, i32, i32) {
    %c0_i32 = arith.constant 0 : i32
    %c0_i32_0 = arith.constant 0 : i32
    %c0_i32_1 = arith.constant 0 : i32
    return %arg0, %c0_i32, %c0_i32_0 : i32, i32, i32
  }
  func.func @transform_1(%arg0: i32) -> (i32, i32, i32) {
    %c0_i32 = arith.constant 0 : i32
    %0 = arith.subi %c0_i32, %arg0 : i32
    %c0_i32_0 = arith.constant 0 : i32
    %c0_i32_1 = arith.constant 0 : i32
    %c0_i32_2 = arith.constant 0 : i32
    return %0, %c0_i32_0, %c0_i32_1 : i32, i32, i32
  }
  func.func @transform_2(%arg0: i32) -> (i32, i32, i32) {
    %c0_i32 = arith.constant 0 : i32
    %c0_i32_0 = arith.constant 0 : i32
    %c0_i32_1 = arith.constant 0 : i32
    return %arg0, %c0_i32, %c0_i32_0 : i32, i32, i32
  }
  func.func @transform_3(%arg0: i32) -> (i32, i32, i32) {
    %c0_i32 = arith.constant 0 : i32
    %0 = arith.subi %c0_i32, %arg0 : i32
    %c0_i32_0 = arith.constant 0 : i32
    %c0_i32_1 = arith.constant 0 : i32
    %c0_i32_2 = arith.constant 0 : i32
    return %0, %c0_i32_0, %c0_i32_1 : i32, i32, i32
  }
  func.func @transform_4(%arg0: i32) -> (i32, i32) {
    %c0_i32 = arith.constant 0 : i32
    %c0_i32_0 = arith.constant 0 : i32
    %c0_i32_1 = arith.constant 0 : i32
    return %c0_i32, %c0_i32_0 : i32, i32
  }
  func.func @transform_5(%arg0: i32) -> (i32, i32) {
    %c0_i32 = arith.constant 0 : i32
    %c0_i32_0 = arith.constant 0 : i32
    %c0_i32_1 = arith.constant 0 : i32
    return %c0_i32, %c0_i32_0 : i32, i32
  }
  func.func @transform_6(%arg0: i32) -> (i32, i32) {
    %c0_i32 = arith.constant 0 : i32
    %c0_i32_0 = arith.constant 0 : i32
    %c0_i32_1 = arith.constant 0 : i32
    return %c0_i32, %c0_i32_0 : i32, i32
  }
  func.func @transform_7(%arg0: i32) -> (i32, i32) {
    %c0_i32 = arith.constant 0 : i32
    %c0_i32_0 = arith.constant 0 : i32
    %c0_i32_1 = arith.constant 0 : i32
    return %c0_i32, %c0_i32_0 : i32, i32
  }
  func.func @transform_8(%arg0: i32) -> (i32, i32, i32) {
    %c0_i32 = arith.constant 0 : i32
    %c0_i32_0 = arith.constant 0 : i32
    %c0_i32_1 = arith.constant 0 : i32
    return %arg0, %c0_i32, %c0_i32_0 : i32, i32, i32
  }
  func.func @transform_9(%arg0: i32) -> (i32, i32, i32) {
    %c0_i32 = arith.constant 0 : i32
    %0 = arith.subi %c0_i32, %arg0 : i32
    %c0_i32_0 = arith.constant 0 : i32
    %c0_i32_1 = arith.constant 0 : i32
    %c0_i32_2 = arith.constant 0 : i32
    return %0, %c0_i32_0, %c0_i32_1 : i32, i32, i32
  }
  func.func @transform_10(%arg0: i32) -> (i32, i32) {
    %c0_i32 = arith.constant 0 : i32
    %c0_i32_0 = arith.constant 0 : i32
    %c0_i32_1 = arith.constant 0 : i32
    return %c0_i32, %c0_i32_0 : i32, i32
  }
  func.func @transform_11(%arg0: i32) -> (i32, i32) {
    %c0_i32 = arith.constant 0 : i32
    %c0_i32_0 = arith.constant 0 : i32
    %c0_i32_1 = arith.constant 0 : i32
    return %c0_i32, %c0_i32_0 : i32, i32
  }
}

</mosaic_0001>

<llo_original>
// kernel: tpu_custom_call.1
$region0: #{tpu_custom_call.1}
  #allocation0 [shape = 'u32[]', space=smem, size = 0x4, offset = 0x4, fixed_abs, tag = 'smem constant byte address 0x4 - core index']
  #allocation1 [shape = 'u32[72,128]{1,0:T(1,128)}', space=vmem, size = 0x9000, scoped, tag = 'internal scratch']
  #allocation2 [shape = 'f32[8,32]{1,0:T(8,128)}', space=vmem, size = 0x1000, scoped, tag = 'scratch operand']
  #allocation3 [shape = 'f32[8,32]{1,0:T(8,128)}', space=vmem, size = 0x1000, scoped, tag = 'scratch operand']
  %s0 = inlined_call_operand.vmem [shape: f32[8,8,96], index: 0, kind: input, shape index: {}]
  %s1 = inlined_call_operand.vmem [shape: f32[8,8,96], index: 1, kind: input, shape index: {}]
  %s2 = inlined_call_operand.vmem [shape: f32[8,8,1], index: 2, kind: input, shape index: {}]
  %s3 = inlined_call_operand.vmem [shape: f32[8,8,1], index: 3, kind: input, shape index: {}]
  %s4 = inlined_call_operand.hbm [shape: f32[32,96], index: 4, kind: input, shape index: {}]
  %s5 = inlined_call_operand.hbm [shape: f32[32,96], index: 5, kind: input, shape index: {}]
  %s6 = inlined_call_operand.vmem [shape: f32[1,96], index: 6, kind: input, shape index: {}]
  %s7 = inlined_call_operand.vmem [shape: f32[1,96], index: 7, kind: input, shape index: {}]
  %s8 = inlined_call_operand.hbm [shape: f32[8,8,32], index: 8, kind: output, shape index: {0}]
  %s9 = inlined_call_operand.hbm [shape: f32[8,8,32], index: 9, kind: output, shape index: {1}]
  %s10 = inlined_call_operand.hbm [shape: f32[8,32], index: 10, kind: output, shape index: {2}]
  %s11 = inlined_call_operand.hbm [shape: f32[8,32], index: 11, kind: output, shape index: {3}]
  %12 = xla_tuple %s8, %s9, %s10, %s11
  %s13 = sld [smem:[#allocation0]]
  $region82: #{tpu_custom_call.1} parent=0
    _
  %s15 = ssub.s32 1, %s13
  %s16 = scalar_select 0, %s15, %s13
  $region1: #{tpu_custom_call.1} parent=0
    #allocation4 [shape = 'u8[16384]{0}', space=vmem, size = 0x4000, scoped, tag = 'input window, operand 4, single buffered']
    #allocation5 [shape = 's32[1]{0}', space=sflag, size = 0x4, scoped, tag = 'scoped memory for tpu_custom_call.1']
    #allocation6 [shape = 's32[1]{0}', space=sflag, size = 0x4, scoped, tag = 'scoped memory for tpu_custom_call.1']
    #allocation7 [shape = 'u8[16384]{0}', space=vmem, size = 0x4000, scoped, tag = 'input window, operand 5, single buffered']
    #allocation8 [shape = 's32[1]{0}', space=sflag, size = 0x4, scoped, tag = 'scoped memory for tpu_custom_call.1']
    #allocation9 [shape = 'u8[32768]{0}', space=vmem, size = 0x8000, scoped, tag = 'output window, operand 0, single buffered']
    #allocation10 [shape = 'u8[32768]{0}', space=vmem, size = 0x8000, scoped, tag = 'output window, operand 1, single buffered']
    #allocation11 [shape = 's32[1]{0}', space=sflag, size = 0x4, scoped, tag = 'scoped memory for tpu_custom_call.1']
    #allocation12 [shape = 'u8[4096]{0}', space=vmem, size = 0x1000, scoped, tag = 'output window, operand 2, single buffered']
    #allocation13 [shape = 'u8[4096]{0}', space=vmem, size = 0x1000, scoped, tag = 'output window, operand 3, single buffered']
    #allocation14 [shape = 's32[1]{0}', space=sflag, size = 0x4, scoped, tag = 'scoped memory for tpu_custom_call.1']
    %17 = vsyncpa [#allocation5], 0
    %18 = vsyncpa [#allocation8], 0
    %19 = vsyncpa [#allocation6], 0
    %20 = vsyncpa [#allocation11], 0
    %21 = vsyncpa [#allocation14], 0
    // Predicated region
    $region2: #{tpu_custom_call.1} parent=1 // pred_check
      _
    $region3: #{tpu_custom_call.1} parent=1 // pred_check_branch
      %23 = sbr.rel (0) target = $region5
    $region4: #{tpu_custom_call.1} parent=1 // pred_region
      _
    $region5: #{tpu_custom_call.1} parent=1 // pred_fallthru
      _
    // Predicated region
    $region6: #{tpu_custom_call.1} parent=1 // pred_check
      _
    $region7: #{tpu_custom_call.1} parent=1 // pred_check_branch
      %25 = sbr.rel (0) target = $region9
    $region8: #{tpu_custom_call.1} parent=1 // pred_region
      %s26 = ssub.s32 0, 0
      %s27 = smul.u32 8, %s26
      %p28 = scmp.lt.s32.totalorder %s27, 7
      %s29 = scalar_select %p28, %s27, 7
      %s30 = smul.addr %s29, 8
      %s31 = scalar_lea.vmem %s1, %s30
      %s32 = ssub.s32 0, 0
      %s33 = smul.u32 8, %s32
    $region9: #{tpu_custom_call.1} parent=1 // pred_fallthru
      _
    // Predicated region
    $region10: #{tpu_custom_call.1} parent=1 // pred_check
      _
    $region11: #{tpu_custom_call.1} parent=1 // pred_check_branch
      %35 = sbr.rel (0) target = $region13
    $region12: #{tpu_custom_call.1} parent=1 // pred_region
      _
    $region13: #{tpu_custom_call.1} parent=1 // pred_fallthru
      _
    // Predicated region
    $region14: #{tpu_custom_call.1} parent=1 // pred_check
      _
    $region15: #{tpu_custom_call.1} parent=1 // pred_check_branch
      %37 = sbr.rel (0) target = $region17
    $region16: #{tpu_custom_call.1} parent=1 // pred_region
      %s38 = ssub.s32 0, 0
      %s39 = smul.u32 8, %s38
      %p40 = scmp.lt.s32.totalorder %s39, 7
      %s41 = scalar_select %p40, %s39, 7
      %s42 = smul.addr %s41, 8
      %s43 = scalar_lea.vmem %s3, %s42
      %s44 = ssub.s32 0, 0
      %s45 = smul.u32 8, %s44
    $region17: #{tpu_custom_call.1} parent=1 // pred_fallthru
      _
    // Predicated region
    $region18: #{tpu_custom_call.1} parent=1 // pred_check
      _
    $region19: #{tpu_custom_call.1} parent=1 // pred_check_branch
      %47 = sbr.rel (0) target = $region21
    $region20: #{tpu_custom_call.1} parent=1 // pred_region
      %49 = vsyncadd [#allocation5], 0
      %s50 = sshll.u32 %s4, 4
      %s51 = int_to_ptr.hbm [resolvable:$true] %s50
      %s52 = sshll.u32 [#allocation4], 4
      %s53 = int_to_ptr.vmem [resolvable:$true] %s52
      %58 = dma.hbm_to_vmem [thread:$0]  %s51, 512, %s53, [#allocation5], 128, 128, 8
    $region21: #{tpu_custom_call.1} parent=1 // pred_fallthru
      _
    // Predicated region
    $region22: #{tpu_custom_call.1} parent=1 // pred_check
      _
    $region23: #{tpu_custom_call.1} parent=1 // pred_check_branch
      %60 = sbr.rel (0) target = $region25
    $region24: #{tpu_custom_call.1} parent=1 // pred_region
      %62 = vsyncadd [#allocation8], 0
      %s63 = sshll.u32 %s5, 4
      %s64 = int_to_ptr.hbm [resolvable:$true] %s63
      %s65 = sshll.u32 [#allocation7], 4
      %s66 = int_to_ptr.vmem [resolvable:$true] %s65
      %71 = dma.hbm_to_vmem [thread:$0]  %s64, 512, %s66, [#allocation8], 128, 128, 8
    $region25: #{tpu_custom_call.1} parent=1 // pred_fallthru
      _
    // Predicated region
    $region26: #{tpu_custom_call.1} parent=1 // pred_check
      _
    $region27: #{tpu_custom_call.1} parent=1 // pred_check_branch
      %73 = sbr.rel (0) target = $region29
    $region28: #{tpu_custom_call.1} parent=1 // pred_region
      _
    $region29: #{tpu_custom_call.1} parent=1 // pred_fallthru
      _
    // Predicated region
    $region30: #{tpu_custom_call.1} parent=1 // pred_check
      _
    $region31: #{tpu_custom_call.1} parent=1 // pred_check_branch
      %75 = sbr.rel (0) target = $region33
    $region32: #{tpu_custom_call.1} parent=1 // pred_region
      _
    $region33: #{tpu_custom_call.1} parent=1 // pred_fallthru
      _
    // Predicated region
    $region34: #{tpu_custom_call.1} parent=1 // pred_check
      _
    $region35: #{tpu_custom_call.1} parent=1 // pred_check_branch
      %77 = sbr.rel (0) target = $region37
    $region36: #{tpu_custom_call.1} parent=1 // pred_region
      %79 = dma.done [#allocation5], 512
    $region37: #{tpu_custom_call.1} parent=1 // pred_fallthru
      _
    // Predicated region
    $region38: #{tpu_custom_call.1} parent=1 // pred_check
      _
    $region39: #{tpu_custom_call.1} parent=1 // pred_check_branch
      %81 = sbr.rel (0) target = $region41
    $region40: #{tpu_custom_call.1} parent=1 // pred_region
      %83 = dma.done [#allocation8], 512
    $region41: #{tpu_custom_call.1} parent=1 // pred_fallthru
      _
    %s84 = ssub.s32 0, 0
    %s85 = smul.u32 8, %s84
    %p86 = scmp.lt.s32.totalorder %s85, 7
    %s87 = scalar_select %p86, %s85, 7
    %s88 = smul.addr %s87, 8
    %s89 = scalar_lea.vmem %s1, %s88
    %s90 = ssub.s32 0, 0
    %s91 = smul.u32 8, %s90
    %p92 = scmp.lt.s32.totalorder %s91, 7
    %s93 = scalar_select %p92, %s91, 7
    %s94 = smul.addr %s93, 8
    %s95 = scalar_lea.vmem %s3, %s94
    %s96 = ssub.s32 0, 0
    %s97 = smul.u32 8, %s96
    %p98 = scmp.lt.s32.totalorder %s97, 7
    %s99 = scalar_select %p98, %s97, 7
    %s100 = smul.addr %s99, 8
    %s101 = scalar_lea.vmem %s1, %s100
    %s102 = ssub.s32 0, 0
    %s103 = smul.u32 8, %s102
    %s104 = ssub.s32 0, 0
    %s105 = smul.u32 8, %s104
    %p106 = scmp.lt.s32.totalorder %s105, 7
    %s107 = scalar_select %p106, %s105, 7
    %s108 = smul.addr %s107, 8
    %s109 = scalar_lea.vmem %s3, %s108
    %s110 = ssub.s32 0, 0
    %s111 = smul.u32 8, %s110
    %s112 = ssub.s32 0, 0
    %s113 = smul.u32 8, %s112
    %p114 = scmp.eq.s32.totalorder 0, 0
    // Predicated region
    $region42: #{tpu_custom_call.1} parent=1 // pred_check
      %p115 = pneg %p114
    $region43: #{tpu_custom_call.1} parent=1 // pred_check_branch
      %117 = sbr.rel (%p115) target = $region45
    $region44: #{tpu_custom_call.1} parent=1 // pred_region
      %vm118 = vcmask 261120
      %119 = vst.msk [vmem:[#allocation2] sm:$0xff] %vm118, 0.0
      %120 = vst.msk [vmem:[#allocation3] sm:$0xff] %vm118, 0.0
    $region45: #{tpu_custom_call.1} parent=1 // pred_fallthru
      _
    %v121 = vld [vmem:[#allocation4] sm:$0xff]
    %v122 = vld [vmem:[#allocation4 + $0x8] sm:$0xff]
    %v123 = vld [vmem:[#allocation4 + $0x10] sm:$0xff]
    %v124 = vld [vmem:[#allocation4 + $0x18] sm:$0xff]
    %v125 = vld [vmem:[#allocation7] sm:$0xff]
    %v126 = vld [vmem:[#allocation7 + $0x8] sm:$0xff]
    %v127 = vld [vmem:[#allocation7 + $0x10] sm:$0xff]
    %v128 = vld [vmem:[#allocation7 + $0x18] sm:$0xff]
    %v129 = vld [vmem:[%s6] sm:$0x1]
    %v130 = vld [vmem:[%s7] sm:$0x1]
    %v131 = vld [vmem:[#allocation2] sm:$0xff]
    %v132 = vld [vmem:[#allocation3] sm:$0xff]
    %v133 = vld [vmem:[%s0] sm:$0xff]
    %v134 = vld [vmem:[%s2] sm:$0xff]
    %v136 = vperm.slane %v129, 0
    %vm138 = vcmask 261120
    %v140 = vsel %vm138, %v131, 0
    %142 = vmatpush.msra.mxu0 0.0
    %143 = vmatpush.msra.mxu0 0.0
    %144 = vmatpush.msra.mxu0 0.0
    %145 = vmatpush.msra.mxu0 0.0
    %146 = vmatpush.msra.mxu0 0.0
    %147 = vmatpush.msra.mxu0 0.0
    %148 = vmatpush.msra.mxu0 0.0
    %149 = vmatpush.msra.mxu0 0.0
    %150 = vmatpush.msra.mxu0 0.0
    %151 = vmatpush.msra.mxu0 0.0
    %152 = vmatpush.msra.mxu0 0.0
    %153 = vmatpush.msra.mxu0 0.0
    %154 = vmatpush.msra.mxu0 %v124
    %155 = vmatpush.msra.mxu0 %v123
    %156 = vmatpush.msra.mxu0 %v122
    %157 = vmatpush.msra.mxu0 %v121
    %158 = vmatmul.f32.gmra.mxu0 %v140
    %v159 = vpop.f32.mrf.mxu0
    %v160 = vadd.f32 %v136, %v159
    %161 = vdwg.mxu0
    %v162 = vadd.f32 %v133, %v160
    %v163 = vxor.u32 %v162, 2147483648
    %v164 = vmul.f32 %v163, 1.442695
    %v165 = vpow.pop %v164
    %v166 = vadd.f32 %v165, 1.0
    %v167 = vrcp.pop %v166
    %v168 = vmul.f32 %v166, %v167
    %v169 = vsub.f32 1.0, %v168
    %v170 = vmul.f32 %v167, %v169
    %v171 = vadd.f32 %v167, %v170
    %vm172 = vweird.f32 %v166
    %vm173 = vweird.f32 %v167
    %vm174 = vmor %vm172, %vm173
    %v175 = vsel %vm174, %v167, %v171
    %v176 = vand.u32 2147483647, %v166
    %vm177 = vcmp.eq.f32.partialorder %v176, 8.507059e+37
    %v178 = vand.u32 %v166, 2147483648
    %v179 = vor.u32 1.1754944e-38, %v178
    %v180 = vsel %vm177, %v179, %v175
    %v181 = vmul.f32 1.0, %v180
    %183 = vrot.lane.b32.xlu0 %v160, 64
    %v184 = vpop.permute.xlu0 %183
    %v186 = vmul.f32 %v181, %v184
    %188 = vrot.lane.b32.xlu0 %v186, 64
    %v189 = vpop.permute.xlu0 %188
    %v191 = vadd.f32 %v133, %v189
    %v192 = vtanh.pop %v191
    %v193 = vsub.f32 1.0, %v181
    %195 = vrot.lane.b32.xlu0 %v192, 96
    %v196 = vpop.permute.xlu0 %195
    %v198 = vmul.f32 %v193, %v196
    %199 = vrot.lane.b32.xlu0 %v131, 32
    %v200 = vpop.permute.xlu0 %199
    %v202 = vmul.f32 %v181, %v200
    %v203 = vadd.f32 %v198, %v202
    %205 = vset.pattern.permute.xlu0 0
    %206 = vperm.xlu0 %205, %v134
    %v207 = vpop.permute.xlu0 %206
    %v209 = vmul.f32 %v207, %v203
    %v210 = vsub.f32 1.0, %v134
    %212 = vset.pattern.permute.xlu0 0
    %213 = vperm.xlu0 %212, %v210
    %v214 = vpop.permute.xlu0 %213
    %v216 = vmul.f32 %v214, %v131
    %218 = vrot.lane.b32.xlu0 %v216, 32
    %v219 = vpop.permute.xlu0 %218
    %v221 = vadd.f32 %v209, %v219
    %223 = vrot.lane.b32.xlu0 %v209, 96
    %v224 = vpop.permute.xlu0 %223
    %226 = vst.msk [vmem:[#allocation9] sm:$0xff] %vm138, %v224
    %s227 = scalar_lea.vmem %s101, 56
    %v228 = vld [vmem:[%s227] sm:$0xff]
    %s229 = scalar_lea.vmem %s109, 56
    %v230 = vld [vmem:[%s229] sm:$0xff]
    %v232 = vperm.slane %v130, 0
    %v235 = vsel %vm138, %v132, 0
    %237 = vmatpush.msra.mxu0 0.0
    %238 = vmatpush.msra.mxu0 0.0
    %239 = vmatpush.msra.mxu0 0.0
    %240 = vmatpush.msra.mxu0 0.0
    %241 = vmatpush.msra.mxu0 0.0
    %242 = vmatpush.msra.mxu0 0.0
    %243 = vmatpush.msra.mxu0 0.0
    %244 = vmatpush.msra.mxu0 0.0
    %245 = vmatpush.msra.mxu0 0.0
    %246 = vmatpush.msra.mxu0 0.0
    %247 = vmatpush.msra.mxu0 0.0
    %248 = vmatpush.msra.mxu0 0.0
    %249 = vmatpush.msra.mxu0 %v128
    %250 = vmatpush.msra.mxu0 %v127
    %251 = vmatpush.msra.mxu0 %v126
    %252 = vmatpush.msra.mxu0 %v125
    %253 = vmatmul.f32.gmra.mxu0 %v235
    %v254 = vpop.f32.mrf.mxu0
    %v255 = vadd.f32 %v232, %v254
    %256 = vdwg.mxu0
    %v257 = vadd.f32 %v228, %v255
    %v258 = vxor.u32 %v257, 2147483648
    %v259 = vmul.f32 %v258, 1.442695
    %v260 = vpow.pop %v259
    %v261 = vadd.f32 %v260, 1.0
    %v262 = vrcp.pop %v261
    %v263 = vmul.f32 %v261, %v262
    %v264 = vsub.f32 1.0, %v263
    %v265 = vmul.f32 %v262, %v264
    %v266 = vadd.f32 %v262, %v265
    %vm267 = vweird.f32 %v261
    %vm268 = vweird.f32 %v262
    %vm269 = vmor %vm267, %vm268
    %v270 = vsel %vm269, %v262, %v266
    %v271 = vand.u32 2147483647, %v261
    %vm272 = vcmp.eq.f32.partialorder %v271, 8.507059e+37
    %v273 = vand.u32 %v261, 2147483648
    %v274 = vor.u32 1.1754944e-38, %v273
    %v275 = vsel %vm272, %v274, %v270
    %v276 = vmul.f32 1.0, %v275
    %278 = vrot.lane.b32.xlu0 %v255, 64
    %v279 = vpop.permute.xlu0 %278
    %v281 = vmul.f32 %v276, %v279
    %283 = vrot.lane.b32.xlu0 %v281, 64
    %v284 = vpop.permute.xlu0 %283
    %v286 = vadd.f32 %v228, %v284
    %v287 = vtanh.pop %v286
    %v288 = vsub.f32 1.0, %v276
    %290 = vrot.lane.b32.xlu0 %v287, 96
    %v291 = vpop.permute.xlu0 %290
    %v293 = vmul.f32 %v288, %v291
    %294 = vrot.lane.b32.xlu0 %v132, 32
    %v295 = vpop.permute.xlu0 %294
    %v297 = vmul.f32 %v276, %v295
    %v298 = vadd.f32 %v293, %v297
    %300 = vset.pattern.permute.xlu0 0
    %301 = vperm.xlu0 %300, %v230
    %v302 = vpop.permute.xlu0 %301
    %v304 = vmul.f32 %v302, %v298
    %v305 = vsub.f32 1.0, %v230
    %307 = vset.pattern.permute.xlu0 0
    %308 = vperm.xlu0 %307, %v305
    %v309 = vpop.permute.xlu0 %308
    %v311 = vmul.f32 %v309, %v132
    %313 = vrot.lane.b32.xlu0 %v311, 32
    %v314 = vpop.permute.xlu0 %313
    %v316 = vadd.f32 %v304, %v314
    %318 = vrot.lane.b32.xlu0 %v304, 96
    %v319 = vpop.permute.xlu0 %318
    %s321 = scalar_lea.vmem [#allocation10], 56
    %322 = vst.msk [vmem:[%s321] sm:$0xff] %vm138, %v319
    %s323 = scalar_lea.vmem %s0, 8
    %v324 = vld [vmem:[%s323] sm:$0xff]
    %s325 = scalar_lea.vmem %s2, 8
    %v326 = vld [vmem:[%s325] sm:$0xff]
    %328 = vrot.lane.b32.xlu0 %v221, 96
    %v329 = vpop.permute.xlu0 %328
    %v330 = vsel %vm138, %v329, 0
    %332 = vmatpush.msra.mxu0 0.0
    %333 = vmatpush.msra.mxu0 0.0
    %334 = vmatpush.msra.mxu0 0.0
    %335 = vmatpush.msra.mxu0 0.0
    %336 = vmatpush.msra.mxu0 0.0
    %337 = vmatpush.msra.mxu0 0.0
    %338 = vmatpush.msra.mxu0 0.0
    %339 = vmatpush.msra.mxu0 0.0
    %340 = vmatpush.msra.mxu0 0.0
    %341 = vmatpush.msra.mxu0 0.0
    %342 = vmatpush.msra.mxu0 0.0
    %343 = vmatpush.msra.mxu0 0.0
    %344 = vmatpush.msra.mxu0 %v124
    %345 = vmatpush.msra.mxu0 %v123
    %346 = vmatpush.msra.mxu0 %v122
    %347 = vmatpush.msra.mxu0 %v121
    %348 = vmatmul.f32.gmra.mxu0 %v330
    %v349 = vpop.f32.mrf.mxu0
    %v350 = vadd.f32 %v136, %v349
    %351 = vdwg.mxu0
    %v352 = vadd.f32 %v324, %v350
    %v353 = vxor.u32 %v352, 2147483648
    %v354 = vmul.f32 %v353, 1.442695
    %v355 = vpow.pop %v354
    %v356 = vadd.f32 %v355, 1.0
    %v357 = vrcp.pop %v356
    %v358 = vmul.f32 %v356, %v357
    %v359 = vsub.f32 1.0, %v358
    %v360 = vmul.f32 %v357, %v359
    %v361 = vadd.f32 %v357, %v360
    %vm362 = vweird.f32 %v356
    %vm363 = vweird.f32 %v357
    %vm364 = vmor %vm362, %vm363
    %v365 = vsel %vm364, %v357, %v361
    %v366 = vand.u32 2147483647, %v356
    %vm367 = vcmp.eq.f32.partialorder %v366, 8.507059e+37
    %v368 = vand.u32 %v356, 2147483648
    %v369 = vor.u32 1.1754944e-38, %v368
    %v370 = vsel %vm367, %v369, %v365
    %v371 = vmul.f32 1.0, %v370
    %373 = vrot.lane.b32.xlu0 %v350, 64
    %v374 = vpop.permute.xlu0 %373
    %v376 = vmul.f32 %v371, %v374
    %378 = vrot.lane.b32.xlu0 %v376, 64
    %v379 = vpop.permute.xlu0 %378
    %v381 = vadd.f32 %v324, %v379
    %v382 = vtanh.pop %v381
    %v383 = vsub.f32 1.0, %v371
    %385 = vrot.lane.b32.xlu0 %v382, 96
    %v386 = vpop.permute.xlu0 %385
    %v388 = vmul.f32 %v383, %v386
    %v389 = vmul.f32 %v371, %v221
    %v390 = vadd.f32 %v388, %v389
    %392 = vset.pattern.permute.xlu0 0
    %393 = vperm.xlu0 %392, %v326
    %v394 = vpop.permute.xlu0 %393
    %v396 = vmul.f32 %v394, %v390
    %v397 = vsub.f32 1.0, %v326
    %399 = vset.pattern.permute.xlu0 0
    %400 = vperm.xlu0 %399, %v397
    %v401 = vpop.permute.xlu0 %400
    %v403 = vmul.f32 %v401, %v221
    %v404 = vadd.f32 %v396, %v403
    %406 = vrot.lane.b32.xlu0 %v396, 96
    %v407 = vpop.permute.xlu0 %406
    %s409 = scalar_lea.vmem [#allocation9], 8
    %410 = vst.msk [vmem:[%s409] sm:$0xff] %vm138, %v407
    %s411 = scalar_lea.vmem %s101, 48
    %v412 = vld [vmem:[%s411] sm:$0xff]
    %s413 = scalar_lea.vmem %s109, 48
    %v414 = vld [vmem:[%s413] sm:$0xff]
    %416 = vrot.lane.b32.xlu0 %v316, 96
    %v417 = vpop.permute.xlu0 %416
    %v418 = vsel %vm138, %v417, 0
    %420 = vmatpush.msra.mxu0 0.0
    %421 = vmatpush.msra.mxu0 0.0
    %422 = vmatpush.msra.mxu0 0.0
    %423 = vmatpush.msra.mxu0 0.0
    %424 = vmatpush.msra.mxu0 0.0
    %425 = vmatpush.msra.mxu0 0.0
    %426 = vmatpush.msra.mxu0 0.0
    %427 = vmatpush.msra.mxu0 0.0
    %428 = vmatpush.msra.mxu0 0.0
    %429 = vmatpush.msra.mxu0 0.0
    %430 = vmatpush.msra.mxu0 0.0
    %431 = vmatpush.msra.mxu0 0.0
    %432 = vmatpush.msra.mxu0 %v128
    %433 = vmatpush.msra.mxu0 %v127
    %434 = vmatpush.msra.mxu0 %v126
    %435 = vmatpush.msra.mxu0 %v125
    %436 = vmatmul.f32.gmra.mxu0 %v418
    %v437 = vpop.f32.mrf.mxu0
    %v438 = vadd.f32 %v232, %v437
    %439 = vdwg.mxu0
    %v440 = vadd.f32 %v412, %v438
    %v441 = vxor.u32 %v440, 2147483648
    %v442 = vmul.f32 %v441, 1.442695
    %v443 = vpow.pop %v442
    %v444 = vadd.f32 %v443, 1.0
    %v445 = vrcp.pop %v444
    %v446 = vmul.f32 %v444, %v445
    %v447 = vsub.f32 1.0, %v446
    %v448 = vmul.f32 %v445, %v447
    %v449 = vadd.f32 %v445, %v448
    %vm450 = vweird.f32 %v444
    %vm451 = vweird.f32 %v445
    %vm452 = vmor %vm450, %vm451
    %v453 = vsel %vm452, %v445, %v449
    %v454 = vand.u32 2147483647, %v444
    %vm455 = vcmp.eq.f32.partialorder %v454, 8.507059e+37
    %v456 = vand.u32 %v444, 2147483648
    %v457 = vor.u32 1.1754944e-38, %v456
    %v458 = vsel %vm455, %v457, %v453
    %v459 = vmul.f32 1.0, %v458
    %461 = vrot.lane.b32.xlu0 %v438, 64
    %v462 = vpop.permute.xlu0 %461
    %v464 = vmul.f32 %v459, %v462
    %466 = vrot.lane.b32.xlu0 %v464, 64
    %v467 = vpop.permute.xlu0 %466
    %v469 = vadd.f32 %v412, %v467
    %v470 = vtanh.pop %v469
    %v471 = vsub.f32 1.0, %v459
    %473 = vrot.lane.b32.xlu0 %v470, 96
    %v474 = vpop.permute.xlu0 %473
    %v476 = vmul.f32 %v471, %v474
    %v477 = vmul.f32 %v459, %v316
    %v478 = vadd.f32 %v476, %v477
    %480 = vset.pattern.permute.xlu0 0
    %481 = vperm.xlu0 %480, %v414
    %v482 = vpop.permute.xlu0 %481
    %v484 = vmul.f32 %v482, %v478
    %v485 = vsub.f32 1.0, %v414
    %487 = vset.pattern.permute.xlu0 0
    %488 = vperm.xlu0 %487, %v485
    %v489 = vpop.permute.xlu0 %488
    %v491 = vmul.f32 %v489, %v316
    %v492 = vadd.f32 %v484, %v491
    %494 = vrot.lane.b32.xlu0 %v484, 96
    %v495 = vpop.permute.xlu0 %494
    %s497 = scalar_lea.vmem [#allocation10], 48
    %498 = vst.msk [vmem:[%s497] sm:$0xff] %vm138, %v495
    %s499 = scalar_lea.vmem %s0, 16
    %v500 = vld [vmem:[%s499] sm:$0xff]
    %s501 = scalar_lea.vmem %s2, 16
    %v502 = vld [vmem:[%s501] sm:$0xff]
    %504 = vrot.lane.b32.xlu0 %v404, 96
    %v505 = vpop.permute.xlu0 %504
    %v506 = vsel %vm138, %v505, 0
    %508 = vmatpush.msra.mxu0 0.0
    %509 = vmatpush.msra.mxu0 0.0
    %510 = vmatpush.msra.mxu0 0.0
    %511 = vmatpush.msra.mxu0 0.0
    %512 = vmatpush.msra.mxu0 0.0
    %513 = vmatpush.msra.mxu0 0.0
    %514 = vmatpush.msra.mxu0 0.0
    %515 = vmatpush.msra.mxu0 0.0
    %516 = vmatpush.msra.mxu0 0.0
    %517 = vmatpush.msra.mxu0 0.0
    %518 = vmatpush.msra.mxu0 0.0
    %519 = vmatpush.msra.mxu0 0.0
    %520 = vmatpush.msra.mxu0 %v124
    %521 = vmatpush.msra.mxu0 %v123
    %522 = vmatpush.msra.mxu0 %v122
    %523 = vmatpush.msra.mxu0 %v121
    %524 = vmatmul.f32.gmra.mxu0 %v506
    %v525 = vpop.f32.mrf.mxu0
    %v526 = vadd.f32 %v136, %v525
    %527 = vdwg.mxu0
    %v528 = vadd.f32 %v500, %v526
    %v529 = vxor.u32 %v528, 2147483648
    %v530 = vmul.f32 %v529, 1.442695
    %v531 = vpow.pop %v530
    %v532 = vadd.f32 %v531, 1.0
    %v533 = vrcp.pop %v532
    %v534 = vmul.f32 %v532, %v533
    %v535 = vsub.f32 1.0, %v534
    %v536 = vmul.f32 %v533, %v535
    %v537 = vadd.f32 %v533, %v536
    %vm538 = vweird.f32 %v532
    %vm539 = vweird.f32 %v533
    %vm540 = vmor %vm538, %vm539
    %v541 = vsel %vm540, %v533, %v537
    %v542 = vand.u32 2147483647, %v532
    %vm543 = vcmp.eq.f32.partialorder %v542, 8.507059e+37
    %v544 = vand.u32 %v532, 2147483648
    %v545 = vor.u32 1.1754944e-38, %v544
    %v546 = vsel %vm543, %v545, %v541
    %v547 = vmul.f32 1.0, %v546
    %549 = vrot.lane.b32.xlu0 %v526, 64
    %v550 = vpop.permute.xlu0 %549
    %v552 = vmul.f32 %v547, %v550
    %554 = vrot.lane.b32.xlu0 %v552, 64
    %v555 = vpop.permute.xlu0 %554
    %v557 = vadd.f32 %v500, %v555
    %v558 = vtanh.pop %v557
    %v559 = vsub.f32 1.0, %v547
    %561 = vrot.lane.b32.xlu0 %v558, 96
    %v562 = vpop.permute.xlu0 %561
    %v564 = vmul.f32 %v559, %v562
    %v565 = vmul.f32 %v547, %v404
    %v566 = vadd.f32 %v564, %v565
    %568 = vset.pattern.permute.xlu0 0
    %569 = vperm.xlu0 %568, %v502
    %v570 = vpop.permute.xlu0 %569
    %v572 = vmul.f32 %v570, %v566
    %v573 = vsub.f32 1.0, %v502
    %575 = vset.pattern.permute.xlu0 0
    %576 = vperm.xlu0 %575, %v573
    %v577 = vpop.permute.xlu0 %576
    %v579 = vmul.f32 %v577, %v404
    %v580 = vadd.f32 %v572, %v579
    %582 = vrot.lane.b32.xlu0 %v572, 96
    %v583 = vpop.permute.xlu0 %582
    %s585 = scalar_lea.vmem [#allocation9], 16
    %586 = vst.msk [vmem:[%s585] sm:$0xff] %vm138, %v583
    %s587 = scalar_lea.vmem %s101, 40
    %v588 = vld [vmem:[%s587] sm:$0xff]
    %s589 = scalar_lea.vmem %s109, 40
    %v590 = vld [vmem:[%s589] sm:$0xff]
    %592 = vrot.lane.b32.xlu0 %v492, 96
    %v593 = vpop.permute.xlu0 %592
    %v594 = vsel %vm138, %v593, 0
    %596 = vmatpush.msra.mxu0 0.0
    %597 = vmatpush.msra.mxu0 0.0
    %598 = vmatpush.msra.mxu0 0.0
    %599 = vmatpush.msra.mxu0 0.0
    %600 = vmatpush.msra.mxu0 0.0
    %601 = vmatpush.msra.mxu0 0.0
    %602 = vmatpush.msra.mxu0 0.0
    %603 = vmatpush.msra.mxu0 0.0
    %604 = vmatpush.msra.mxu0 0.0
    %605 = vmatpush.msra.mxu0 0.0
    %606 = vmatpush.msra.mxu0 0.0
    %607 = vmatpush.msra.mxu0 0.0
    %608 = vmatpush.msra.mxu0 %v128
    %609 = vmatpush.msra.mxu0 %v127
    %610 = vmatpush.msra.mxu0 %v126
    %611 = vmatpush.msra.mxu0 %v125
    %612 = vmatmul.f32.gmra.mxu0 %v594
    %v613 = vpop.f32.mrf.mxu0
    %v614 = vadd.f32 %v232, %v613
    %615 = vdwg.mxu0
    %v616 = vadd.f32 %v588, %v614
    %v617 = vxor.u32 %v616, 2147483648
    %v618 = vmul.f32 %v617, 1.442695
    %v619 = vpow.pop %v618
    %v620 = vadd.f32 %v619, 1.0
    %v621 = vrcp.pop %v620
    %v622 = vmul.f32 %v620, %v621
    %v623 = vsub.f32 1.0, %v622
    %v624 = vmul.f32 %v621, %v623
    %v625 = vadd.f32 %v621, %v624
    %vm626 = vweird.f32 %v620
    %vm627 = vweird.f32 %v621
    %vm628 = vmor %vm626, %vm627
    %v629 = vsel %vm628, %v621, %v625
    %v630 = vand.u32 2147483647, %v620
    %vm631 = vcmp.eq.f32.partialorder %v630, 8.507059e+37
    %v632 = vand.u32 %v620, 2147483648
    %v633 = vor.u32 1.1754944e-38, %v632
    %v634 = vsel %vm631, %v633, %v629
    %v635 = vmul.f32 1.0, %v634
    %637 = vrot.lane.b32.xlu0 %v614, 64
    %v638 = vpop.permute.xlu0 %637
    %v640 = vmul.f32 %v635, %v638
    %642 = vrot.lane.b32.xlu0 %v640, 64
    %v643 = vpop.permute.xlu0 %642
    %v645 = vadd.f32 %v588, %v643
    %v646 = vtanh.pop %v645
    %v647 = vsub.f32 1.0, %v635
    %649 = vrot.lane.b32.xlu0 %v646, 96
    %v650 = vpop.permute.xlu0 %649
    %v652 = vmul.f32 %v647, %v650
    %v653 = vmul.f32 %v635, %v492
    %v654 = vadd.f32 %v652, %v653
    %656 = vset.pattern.permute.xlu0 0
    %657 = vperm.xlu0 %656, %v590
    %v658 = vpop.permute.xlu0 %657
    %v660 = vmul.f32 %v658, %v654
    %v661 = vsub.f32 1.0, %v590
    %663 = vset.pattern.permute.xlu0 0
    %664 = vperm.xlu0 %663, %v661
    %v665 = vpop.permute.xlu0 %664
    %v667 = vmul.f32 %v665, %v492
    %v668 = vadd.f32 %v660, %v667
    %670 = vrot.lane.b32.xlu0 %v660, 96
    %v671 = vpop.permute.xlu0 %670
    %s673 = scalar_lea.vmem [#allocation10], 40
    %674 = vst.msk [vmem:[%s673] sm:$0xff] %vm138, %v671
    %s675 = scalar_lea.vmem %s0, 24
    %v676 = vld [vmem:[%s675] sm:$0xff]
    %s677 = scalar_lea.vmem %s2, 24
    %v678 = vld [vmem:[%s677] sm:$0xff]
    %680 = vrot.lane.b32.xlu0 %v580, 96
    %v681 = vpop.permute.xlu0 %680
    %v682 = vsel %vm138, %v681, 0
    %684 = vmatpush.msra.mxu0 0.0
    %685 = vmatpush.msra.mxu0 0.0
    %686 = vmatpush.msra.mxu0 0.0
    %687 = vmatpush.msra.mxu0 0.0
    %688 = vmatpush.msra.mxu0 0.0
    %689 = vmatpush.msra.mxu0 0.0
    %690 = vmatpush.msra.mxu0 0.0
    %691 = vmatpush.msra.mxu0 0.0
    %692 = vmatpush.msra.mxu0 0.0
    %693 = vmatpush.msra.mxu0 0.0
    %694 = vmatpush.msra.mxu0 0.0
    %695 = vmatpush.msra.mxu0 0.0
    %696 = vmatpush.msra.mxu0 %v124
    %697 = vmatpush.msra.mxu0 %v123
    %698 = vmatpush.msra.mxu0 %v122
    %699 = vmatpush.msra.mxu0 %v121
    %700 = vmatmul.f32.gmra.mxu0 %v682
    %v701 = vpop.f32.mrf.mxu0
    %v702 = vadd.f32 %v136, %v701
    %703 = vdwg.mxu0
    %v704 = vadd.f32 %v676, %v702
    %v705 = vxor.u32 %v704, 2147483648
    %v706 = vmul.f32 %v705, 1.442695
    %v707 = vpow.pop %v706
    %v708 = vadd.f32 %v707, 1.0
    %v709 = vrcp.pop %v708
    %v710 = vmul.f32 %v708, %v709
    %v711 = vsub.f32 1.0, %v710
    %v712 = vmul.f32 %v709, %v711
    %v713 = vadd.f32 %v709, %v712
    %vm714 = vweird.f32 %v708
    %vm715 = vweird.f32 %v709
    %vm716 = vmor %vm714, %vm715
    %v717 = vsel %vm716, %v709, %v713
    %v718 = vand.u32 2147483647, %v708
    %vm719 = vcmp.eq.f32.partialorder %v718, 8.507059e+37
    %v720 = vand.u32 %v708, 2147483648
    %v721 = vor.u32 1.1754944e-38, %v720
    %v722 = vsel %vm719, %v721, %v717
    %v723 = vmul.f32 1.0, %v722
    %725 = vrot.lane.b32.xlu0 %v702, 64
    %v726 = vpop.permute.xlu0 %725
    %v728 = vmul.f32 %v723, %v726
    %730 = vrot.lane.b32.xlu0 %v728, 64
    %v731 = vpop.permute.xlu0 %730
    %v733 = vadd.f32 %v676, %v731
    %v734 = vtanh.pop %v733
    %v735 = vsub.f32 1.0, %v723
    %737 = vrot.lane.b32.xlu0 %v734, 96
    %v738 = vpop.permute.xlu0 %737
    %v740 = vmul.f32 %v735, %v738
    %v741 = vmul.f32 %v723, %v580
    %v742 = vadd.f32 %v740, %v741
    %744 = vset.pattern.permute.xlu0 0
    %745 = vperm.xlu0 %744, %v678
    %v746 = vpop.permute.xlu0 %745
    %v748 = vmul.f32 %v746, %v742
    %v749 = vsub.f32 1.0, %v678
    %751 = vset.pattern.permute.xlu0 0
    %752 = vperm.xlu0 %751, %v749
    %v753 = vpop.permute.xlu0 %752
    %v755 = vmul.f32 %v753, %v580
    %v756 = vadd.f32 %v748, %v755
    %758 = vrot.lane.b32.xlu0 %v748, 96
    %v759 = vpop.permute.xlu0 %758
    %s761 = scalar_lea.vmem [#allocation9], 24
    %762 = vst.msk [vmem:[%s761] sm:$0xff] %vm138, %v759
    %s763 = scalar_lea.vmem %s101, 32
    %v764 = vld [vmem:[%s763] sm:$0xff]
    %s765 = scalar_lea.vmem %s109, 32
    %v766 = vld [vmem:[%s765] sm:$0xff]
    %768 = vrot.lane.b32.xlu0 %v668, 96
    %v769 = vpop.permute.xlu0 %768
    %v770 = vsel %vm138, %v769, 0
    %772 = vmatpush.msra.mxu0 0.0
    %773 = vmatpush.msra.mxu0 0.0
    %774 = vmatpush.msra.mxu0 0.0
    %775 = vmatpush.msra.mxu0 0.0
    %776 = vmatpush.msra.mxu0 0.0
    %777 = vmatpush.msra.mxu0 0.0
    %778 = vmatpush.msra.mxu0 0.0
    %779 = vmatpush.msra.mxu0 0.0
    %780 = vmatpush.msra.mxu0 0.0
    %781 = vmatpush.msra.mxu0 0.0
    %782 = vmatpush.msra.mxu0 0.0
    %783 = vmatpush.msra.mxu0 0.0
    %784 = vmatpush.msra.mxu0 %v128
    %785 = vmatpush.msra.mxu0 %v127
    %786 = vmatpush.msra.mxu0 %v126
    %787 = vmatpush.msra.mxu0 %v125
    %788 = vmatmul.f32.gmra.mxu0 %v770
    %v789 = vpop.f32.mrf.mxu0
    %v790 = vadd.f32 %v232, %v789
    %791 = vdwg.mxu0
    %v792 = vadd.f32 %v764, %v790
    %v793 = vxor.u32 %v792, 2147483648
    %v794 = vmul.f32 %v793, 1.442695
    %v795 = vpow.pop %v794
    %v796 = vadd.f32 %v795, 1.0
    %v797 = vrcp.pop %v796
    %v798 = vmul.f32 %v796, %v797
    %v799 = vsub.f32 1.0, %v798
    %v800 = vmul.f32 %v797, %v799
    %v801 = vadd.f32 %v797, %v800
    %vm802 = vweird.f32 %v796
    %vm803 = vweird.f32 %v797
    %vm804 = vmor %vm802, %vm803
    %v805 = vsel %vm804, %v797, %v801
    %v806 = vand.u32 2147483647, %v796
    %vm807 = vcmp.eq.f32.partialorder %v806, 8.507059e+37
    %v808 = vand.u32 %v796, 2147483648
    %v809 = vor.u32 1.1754944e-38, %v808
    %v810 = vsel %vm807, %v809, %v805
    %v811 = vmul.f32 1.0, %v810
    %813 = vrot.lane.b32.xlu0 %v790, 64
    %v814 = vpop.permute.xlu0 %813
    %v816 = vmul.f32 %v811, %v814
    %818 = vrot.lane.b32.xlu0 %v816, 64
    %v819 = vpop.permute.xlu0 %818
    %v821 = vadd.f32 %v764, %v819
    %v822 = vtanh.pop %v821
    %v823 = vsub.f32 1.0, %v811
    %825 = vrot.lane.b32.xlu0 %v822, 96
    %v826 = vpop.permute.xlu0 %825
    %v828 = vmul.f32 %v823, %v826
    %v829 = vmul.f32 %v811, %v668
    %v830 = vadd.f32 %v828, %v829
    %832 = vset.pattern.permute.xlu0 0
    %833 = vperm.xlu0 %832, %v766
    %v834 = vpop.permute.xlu0 %833
    %v836 = vmul.f32 %v834, %v830
    %v837 = vsub.f32 1.0, %v766
    %839 = vset.pattern.permute.xlu0 0
    %840 = vperm.xlu0 %839, %v837
    %v841 = vpop.permute.xlu0 %840
    %v843 = vmul.f32 %v841, %v668
    %v844 = vadd.f32 %v836, %v843
    %846 = vrot.lane.b32.xlu0 %v836, 96
    %v847 = vpop.permute.xlu0 %846
    %s849 = scalar_lea.vmem [#allocation10], 32
    %850 = vst.msk [vmem:[%s849] sm:$0xff] %vm138, %v847
    %s851 = scalar_lea.vmem %s0, 32
    %v852 = vld [vmem:[%s851] sm:$0xff]
    %s853 = scalar_lea.vmem %s2, 32
    %v854 = vld [vmem:[%s853] sm:$0xff]
    %856 = vrot.lane.b32.xlu0 %v756, 96
    %v857 = vpop.permute.xlu0 %856
    %v858 = vsel %vm138, %v857, 0
    %860 = vmatpush.msra.mxu0 0.0
    %861 = vmatpush.msra.mxu0 0.0
    %862 = vmatpush.msra.mxu0 0.0
    %863 = vmatpush.msra.mxu0 0.0
    %864 = vmatpush.msra.mxu0 0.0
    %865 = vmatpush.msra.mxu0 0.0
    %866 = vmatpush.msra.mxu0 0.0
    %867 = vmatpush.msra.mxu0 0.0
    %868 = vmatpush.msra.mxu0 0.0
    %869 = vmatpush.msra.mxu0 0.0
    %870 = vmatpush.msra.mxu0 0.0
    %871 = vmatpush.msra.mxu0 0.0
    %872 = vmatpush.msra.mxu0 %v124
    %873 = vmatpush.msra.mxu0 %v123
    %874 = vmatpush.msra.mxu0 %v122
    %875 = vmatpush.msra.mxu0 %v121
    %876 = vmatmul.f32.gmra.mxu0 %v858
    %v877 = vpop.f32.mrf.mxu0
    %v878 = vadd.f32 %v136, %v877
    %879 = vdwg.mxu0
    %v880 = vadd.f32 %v852, %v878
    %v881 = vxor.u32 %v880, 2147483648
    %v882 = vmul.f32 %v881, 1.442695
    %v883 = vpow.pop %v882
    %v884 = vadd.f32 %v883, 1.0
    %v885 = vrcp.pop %v884
    %v886 = vmul.f32 %v884, %v885
    %v887 = vsub.f32 1.0, %v886
    %v888 = vmul.f32 %v885, %v887
    %v889 = vadd.f32 %v885, %v888
    %vm890 = vweird.f32 %v884
    %vm891 = vweird.f32 %v885
    %vm892 = vmor %vm890, %vm891
    %v893 = vsel %vm892, %v885, %v889
    %v894 = vand.u32 2147483647, %v884
    %vm895 = vcmp.eq.f32.partialorder %v894, 8.507059e+37
    %v896 = vand.u32 %v884, 2147483648
    %v897 = vor.u32 1.1754944e-38, %v896
    %v898 = vsel %vm895, %v897, %v893
    %v899 = vmul.f32 1.0, %v898
    %901 = vrot.lane.b32.xlu0 %v878, 64
    %v902 = vpop.permute.xlu0 %901
    %v904 = vmul.f32 %v899, %v902
    %906 = vrot.lane.b32.xlu0 %v904, 64
    %v907 = vpop.permute.xlu0 %906
    %v909 = vadd.f32 %v852, %v907
    %v910 = vtanh.pop %v909
    %v911 = vsub.f32 1.0, %v899
    %913 = vrot.lane.b32.xlu0 %v910, 96
    %v914 = vpop.permute.xlu0 %913
    %v916 = vmul.f32 %v911, %v914
    %v917 = vmul.f32 %v899, %v756
    %v918 = vadd.f32 %v916, %v917
    %920 = vset.pattern.permute.xlu0 0
    %921 = vperm.xlu0 %920, %v854
    %v922 = vpop.permute.xlu0 %921
    %v924 = vmul.f32 %v922, %v918
    %v925 = vsub.f32 1.0, %v854
    %927 = vset.pattern.permute.xlu0 0
    %928 = vperm.xlu0 %927, %v925
    %v929 = vpop.permute.xlu0 %928
    %v931 = vmul.f32 %v929, %v756
    %v932 = vadd.f32 %v924, %v931
    %934 = vrot.lane.b32.xlu0 %v924, 96
    %v935 = vpop.permute.xlu0 %934
    %s937 = scalar_lea.vmem [#allocation9], 32
    %938 = vst.msk [vmem:[%s937] sm:$0xff] %vm138, %v935
    %s939 = scalar_lea.vmem %s101, 24
    %v940 = vld [vmem:[%s939] sm:$0xff]
    %s941 = scalar_lea.vmem %s109, 24
    %v942 = vld [vmem:[%s941] sm:$0xff]
    %944 = vrot.lane.b32.xlu0 %v844, 96
    %v945 = vpop.permute.xlu0 %944
    %v946 = vsel %vm138, %v945, 0
    %948 = vmatpush.msra.mxu0 0.0
    %949 = vmatpush.msra.mxu0 0.0
    %950 = vmatpush.msra.mxu0 0.0
    %951 = vmatpush.msra.mxu0 0.0
    %952 = vmatpush.msra.mxu0 0.0
    %953 = vmatpush.msra.mxu0 0.0
    %954 = vmatpush.msra.mxu0 0.0
    %955 = vmatpush.msra.mxu0 0.0
    %956 = vmatpush.msra.mxu0 0.0
    %957 = vmatpush.msra.mxu0 0.0
    %958 = vmatpush.msra.mxu0 0.0
    %959 = vmatpush.msra.mxu0 0.0
    %960 = vmatpush.msra.mxu0 %v128
    %961 = vmatpush.msra.mxu0 %v127
    %962 = vmatpush.msra.mxu0 %v126
    %963 = vmatpush.msra.mxu0 %v125
    %964 = vmatmul.f32.gmra.mxu0 %v946
    %v965 = vpop.f32.mrf.mxu0
    %v966 = vadd.f32 %v232, %v965
    %967 = vdwg.mxu0
    %v968 = vadd.f32 %v940, %v966
    %v969 = vxor.u32 %v968, 2147483648
    %v970 = vmul.f32 %v969, 1.442695
    %v971 = vpow.pop %v970
    %v972 = vadd.f32 %v971, 1.0
    %v973 = vrcp.pop %v972
    %v974 = vmul.f32 %v972, %v973
    %v975 = vsub.f32 1.0, %v974
    %v976 = vmul.f32 %v973, %v975
    %v977 = vadd.f32 %v973, %v976
    %vm978 = vweird.f32 %v972
    %vm979 = vweird.f32 %v973
    %vm980 = vmor %vm978, %vm979
    %v981 = vsel %vm980, %v973, %v977
    %v982 = vand.u32 2147483647, %v972
    %vm983 = vcmp.eq.f32.partialorder %v982, 8.507059e+37
    %v984 = vand.u32 %v972, 2147483648
    %v985 = vor.u32 1.1754944e-38, %v984
    %v986 = vsel %vm983, %v985, %v981
    %v987 = vmul.f32 1.0, %v986
    %989 = vrot.lane.b32.xlu0 %v966, 64
    %v990 = vpop.permute.xlu0 %989
    %v992 = vmul.f32 %v987, %v990
    %994 = vrot.lane.b32.xlu0 %v992, 64
    %v995 = vpop.permute.xlu0 %994
    %v997 = vadd.f32 %v940, %v995
    %v998 = vtanh.pop %v997
    %v999 = vsub.f32 1.0, %v987
    %1001 = vrot.lane.b32.xlu0 %v998, 96
    %v1002 = vpop.permute.xlu0 %1001
    %v1004 = vmul.f32 %v999, %v1002
    %v1005 = vmul.f32 %v987, %v844
    %v1006 = vadd.f32 %v1004, %v1005
    %1008 = vset.pattern.permute.xlu0 0
    %1009 = vperm.xlu0 %1008, %v942
    %v1010 = vpop.permute.xlu0 %1009
    %v1012 = vmul.f32 %v1010, %v1006
    %v1013 = vsub.f32 1.0, %v942
    %1015 = vset.pattern.permute.xlu0 0
    %1016 = vperm.xlu0 %1015, %v1013
    %v1017 = vpop.permute.xlu0 %1016
    %v1019 = vmul.f32 %v1017, %v844
    %v1020 = vadd.f32 %v1012, %v1019
    %1022 = vrot.lane.b32.xlu0 %v1012, 96
    %v1023 = vpop.permute.xlu0 %1022
    %s1025 = scalar_lea.vmem [#allocation10], 24
    %1026 = vst.msk [vmem:[%s1025] sm:$0xff] %vm138, %v1023
    %s1027 = scalar_lea.vmem %s0, 40
    %v1028 = vld [vmem:[%s1027] sm:$0xff]
    %s1029 = scalar_lea.vmem %s2, 40
    %v1030 = vld [vmem:[%s1029] sm:$0xff]
    %1032 = vrot.lane.b32.xlu0 %v932, 96
    %v1033 = vpop.permute.xlu0 %1032
    %v1034 = vsel %vm138, %v1033, 0
    %1036 = vmatpush.msra.mxu0 0.0
    %1037 = vmatpush.msra.mxu0 0.0
    %1038 = vmatpush.msra.mxu0 0.0
    %1039 = vmatpush.msra.mxu0 0.0
    %1040 = vmatpush.msra.mxu0 0.0
    %1041 = vmatpush.msra.mxu0 0.0
    %1042 = vmatpush.msra.mxu0 0.0
    %1043 = vmatpush.msra.mxu0 0.0
    %1044 = vmatpush.msra.mxu0 0.0
    %1045 = vmatpush.msra.mxu0 0.0
    %1046 = vmatpush.msra.mxu0 0.0
    %1047 = vmatpush.msra.mxu0 0.0
    %1048 = vmatpush.msra.mxu0 %v124
    %1049 = vmatpush.msra.mxu0 %v123
    %1050 = vmatpush.msra.mxu0 %v122
    %1051 = vmatpush.msra.mxu0 %v121
    %1052 = vmatmul.f32.gmra.mxu0 %v1034
    %v1053 = vpop.f32.mrf.mxu0
    %v1054 = vadd.f32 %v136, %v1053
    %1055 = vdwg.mxu0
    %v1056 = vadd.f32 %v1028, %v1054
    %v1057 = vxor.u32 %v1056, 2147483648
    %v1058 = vmul.f32 %v1057, 1.442695
    %v1059 = vpow.pop %v1058
    %v1060 = vadd.f32 %v1059, 1.0
    %v1061 = vrcp.pop %v1060
    %v1062 = vmul.f32 %v1060, %v1061
    %v1063 = vsub.f32 1.0, %v1062
    %v1064 = vmul.f32 %v1061, %v1063
    %v1065 = vadd.f32 %v1061, %v1064
    %vm1066 = vweird.f32 %v1060
    %vm1067 = vweird.f32 %v1061
    %vm1068 = vmor %vm1066, %vm1067
    %v1069 = vsel %vm1068, %v1061, %v1065
    %v1070 = vand.u32 2147483647, %v1060
    %vm1071 = vcmp.eq.f32.partialorder %v1070, 8.507059e+37
    %v1072 = vand.u32 %v1060, 2147483648
    %v1073 = vor.u32 1.1754944e-38, %v1072
    %v1074 = vsel %vm1071, %v1073, %v1069
    %v1075 = vmul.f32 1.0, %v1074
    %1077 = vrot.lane.b32.xlu0 %v1054, 64
    %v1078 = vpop.permute.xlu0 %1077
    %v1080 = vmul.f32 %v1075, %v1078
    %1082 = vrot.lane.b32.xlu0 %v1080, 64
    %v1083 = vpop.permute.xlu0 %1082
    %v1085 = vadd.f32 %v1028, %v1083
    %v1086 = vtanh.pop %v1085
    %v1087 = vsub.f32 1.0, %v1075
    %1089 = vrot.lane.b32.xlu0 %v1086, 96
    %v1090 = vpop.permute.xlu0 %1089
    %v1092 = vmul.f32 %v1087, %v1090
    %v1093 = vmul.f32 %v1075, %v932
    %v1094 = vadd.f32 %v1092, %v1093
    %1096 = vset.pattern.permute.xlu0 0
    %1097 = vperm.xlu0 %1096, %v1030
    %v1098 = vpop.permute.xlu0 %1097
    %v1100 = vmul.f32 %v1098, %v1094
    %v1101 = vsub.f32 1.0, %v1030
    %1103 = vset.pattern.permute.xlu0 0
    %1104 = vperm.xlu0 %1103, %v1101
    %v1105 = vpop.permute.xlu0 %1104
    %v1107 = vmul.f32 %v1105, %v932
    %v1108 = vadd.f32 %v1100, %v1107
    %1110 = vrot.lane.b32.xlu0 %v1100, 96
    %v1111 = vpop.permute.xlu0 %1110
    %s1113 = scalar_lea.vmem [#allocation9], 40
    %1114 = vst.msk [vmem:[%s1113] sm:$0xff] %vm138, %v1111
    %s1115 = scalar_lea.vmem %s101, 16
    %v1116 = vld [vmem:[%s1115] sm:$0xff]
    %s1117 = scalar_lea.vmem %s109, 16
    %v1118 = vld [vmem:[%s1117] sm:$0xff]
    %1120 = vrot.lane.b32.xlu0 %v1020, 96
    %v1121 = vpop.permute.xlu0 %1120
    %v1122 = vsel %vm138, %v1121, 0
    %1124 = vmatpush.msra.mxu0 0.0
    %1125 = vmatpush.msra.mxu0 0.0
    %1126 = vmatpush.msra.mxu0 0.0
    %1127 = vmatpush.msra.mxu0 0.0
    %1128 = vmatpush.msra.mxu0 0.0
    %1129 = vmatpush.msra.mxu0 0.0
    %1130 = vmatpush.msra.mxu0 0.0
    %1131 = vmatpush.msra.mxu0 0.0
    %1132 = vmatpush.msra.mxu0 0.0
    %1133 = vmatpush.msra.mxu0 0.0
    %1134 = vmatpush.msra.mxu0 0.0
    %1135 = vmatpush.msra.mxu0 0.0
    %1136 = vmatpush.msra.mxu0 %v128
    %1137 = vmatpush.msra.mxu0 %v127
    %1138 = vmatpush.msra.mxu0 %v126
    %1139 = vmatpush.msra.mxu0 %v125
    %1140 = vmatmul.f32.gmra.mxu0 %v1122
    %v1141 = vpop.f32.mrf.mxu0
    %v1142 = vadd.f32 %v232, %v1141
    %1143 = vdwg.mxu0
    %v1144 = vadd.f32 %v1116, %v1142
    %v1145 = vxor.u32 %v1144, 2147483648
    %v1146 = vmul.f32 %v1145, 1.442695
    %v1147 = vpow.pop %v1146
    %v1148 = vadd.f32 %v1147, 1.0
    %v1149 = vrcp.pop %v1148
    %v1150 = vmul.f32 %v1148, %v1149
    %v1151 = vsub.f32 1.0, %v1150
    %v1152 = vmul.f32 %v1149, %v1151
    %v1153 = vadd.f32 %v1149, %v1152
    %vm1154 = vweird.f32 %v1148
    %vm1155 = vweird.f32 %v1149
    %vm1156 = vmor %vm1154, %vm1155
    %v1157 = vsel %vm1156, %v1149, %v1153
    %v1158 = vand.u32 2147483647, %v1148
    %vm1159 = vcmp.eq.f32.partialorder %v1158, 8.507059e+37
    %v1160 = vand.u32 %v1148, 2147483648
    %v1161 = vor.u32 1.1754944e-38, %v1160
    %v1162 = vsel %vm1159, %v1161, %v1157
    %v1163 = vmul.f32 1.0, %v1162
    %1165 = vrot.lane.b32.xlu0 %v1142, 64
    %v1166 = vpop.permute.xlu0 %1165
    %v1168 = vmul.f32 %v1163, %v1166
    %1170 = vrot.lane.b32.xlu0 %v1168, 64
    %v1171 = vpop.permute.xlu0 %1170
    %v1173 = vadd.f32 %v1116, %v1171
    %v1174 = vtanh.pop %v1173
    %v1175 = vsub.f32 1.0, %v1163
    %1177 = vrot.lane.b32.xlu0 %v1174, 96
    %v1178 = vpop.permute.xlu0 %1177
    %v1180 = vmul.f32 %v1175, %v1178
    %v1181 = vmul.f32 %v1163, %v1020
    %v1182 = vadd.f32 %v1180, %v1181
    %1184 = vset.pattern.permute.xlu0 0
    %1185 = vperm.xlu0 %1184, %v1118
    %v1186 = vpop.permute.xlu0 %1185
    %v1188 = vmul.f32 %v1186, %v1182
    %v1189 = vsub.f32 1.0, %v1118
    %1191 = vset.pattern.permute.xlu0 0
    %1192 = vperm.xlu0 %1191, %v1189
    %v1193 = vpop.permute.xlu0 %1192
    %v1195 = vmul.f32 %v1193, %v1020
    %v1196 = vadd.f32 %v1188, %v1195
    %1198 = vrot.lane.b32.xlu0 %v1188, 96
    %v1199 = vpop.permute.xlu0 %1198
    %s1201 = scalar_lea.vmem [#allocation10], 16
    %1202 = vst.msk [vmem:[%s1201] sm:$0xff] %vm138, %v1199
    %s1203 = scalar_lea.vmem %s0, 48
    %v1204 = vld [vmem:[%s1203] sm:$0xff]
    %s1205 = scalar_lea.vmem %s2, 48
    %v1206 = vld [vmem:[%s1205] sm:$0xff]
    %1208 = vrot.lane.b32.xlu0 %v1108, 96
    %v1209 = vpop.permute.xlu0 %1208
    %v1210 = vsel %vm138, %v1209, 0
    %1212 = vmatpush.msra.mxu0 0.0
    %1213 = vmatpush.msra.mxu0 0.0
    %1214 = vmatpush.msra.mxu0 0.0
    %1215 = vmatpush.msra.mxu0 0.0
    %1216 = vmatpush.msra.mxu0 0.0
    %1217 = vmatpush.msra.mxu0 0.0
    %1218 = vmatpush.msra.mxu0 0.0
    %1219 = vmatpush.msra.mxu0 0.0
    %1220 = vmatpush.msra.mxu0 0.0
    %1221 = vmatpush.msra.mxu0 0.0
    %1222 = vmatpush.msra.mxu0 0.0
    %1223 = vmatpush.msra.mxu0 0.0
    %1224 = vmatpush.msra.mxu0 %v124
    %1225 = vmatpush.msra.mxu0 %v123
    %1226 = vmatpush.msra.mxu0 %v122
    %1227 = vmatpush.msra.mxu0 %v121
    %1228 = vmatmul.f32.gmra.mxu0 %v1210
    %v1229 = vpop.f32.mrf.mxu0
    %v1230 = vadd.f32 %v136, %v1229
    %1231 = vdwg.mxu0
    %v1232 = vadd.f32 %v1204, %v1230
    %v1233 = vxor.u32 %v1232, 2147483648
    %v1234 = vmul.f32 %v1233, 1.442695
    %v1235 = vpow.pop %v1234
    %v1236 = vadd.f32 %v1235, 1.0
    %v1237 = vrcp.pop %v1236
    %v1238 = vmul.f32 %v1236, %v1237
    %v1239 = vsub.f32 1.0, %v1238
    %v1240 = vmul.f32 %v1237, %v1239
    %v1241 = vadd.f32 %v1237, %v1240
    %vm1242 = vweird.f32 %v1236
    %vm1243 = vweird.f32 %v1237
    %vm1244 = vmor %vm1242, %vm1243
    %v1245 = vsel %vm1244, %v1237, %v1241
    %v1246 = vand.u32 2147483647, %v1236
    %vm1247 = vcmp.eq.f32.partialorder %v1246, 8.507059e+37
    %v1248 = vand.u32 %v1236, 2147483648
    %v1249 = vor.u32 1.1754944e-38, %v1248
    %v1250 = vsel %vm1247, %v1249, %v1245
    %v1251 = vmul.f32 1.0, %v1250
    %1253 = vrot.lane.b32.xlu0 %v1230, 64
    %v1254 = vpop.permute.xlu0 %1253
    %v1256 = vmul.f32 %v1251, %v1254
    %1258 = vrot.lane.b32.xlu0 %v1256, 64
    %v1259 = vpop.permute.xlu0 %1258
    %v1261 = vadd.f32 %v1204, %v1259
    %v1262 = vtanh.pop %v1261
    %v1263 = vsub.f32 1.0, %v1251
    %1265 = vrot.lane.b32.xlu0 %v1262, 96
    %v1266 = vpop.permute.xlu0 %1265
    %v1268 = vmul.f32 %v1263, %v1266
    %v1269 = vmul.f32 %v1251, %v1108
    %v1270 = vadd.f32 %v1268, %v1269
    %1272 = vset.pattern.permute.xlu0 0
    %1273 = vperm.xlu0 %1272, %v1206
    %v1274 = vpop.permute.xlu0 %1273
    %v1276 = vmul.f32 %v1274, %v1270
    %v1277 = vsub.f32 1.0, %v1206
    %1279 = vset.pattern.permute.xlu0 0
    %1280 = vperm.xlu0 %1279, %v1277
    %v1281 = vpop.permute.xlu0 %1280
    %v1283 = vmul.f32 %v1281, %v1108
    %v1284 = vadd.f32 %v1276, %v1283
    %1286 = vrot.lane.b32.xlu0 %v1276, 96
    %v1287 = vpop.permute.xlu0 %1286
    %s1289 = scalar_lea.vmem [#allocation9], 48
    %1290 = vst.msk [vmem:[%s1289] sm:$0xff] %vm138, %v1287
    %s1291 = scalar_lea.vmem %s101, 8
    %v1292 = vld [vmem:[%s1291] sm:$0xff]
    %s1293 = scalar_lea.vmem %s109, 8
    %v1294 = vld [vmem:[%s1293] sm:$0xff]
    %1296 = vrot.lane.b32.xlu0 %v1196, 96
    %v1297 = vpop.permute.xlu0 %1296
    %v1298 = vsel %vm138, %v1297, 0
    %1300 = vmatpush.msra.mxu0 0.0
    %1301 = vmatpush.msra.mxu0 0.0
    %1302 = vmatpush.msra.mxu0 0.0
    %1303 = vmatpush.msra.mxu0 0.0
    %1304 = vmatpush.msra.mxu0 0.0
    %1305 = vmatpush.msra.mxu0 0.0
    %1306 = vmatpush.msra.mxu0 0.0
    %1307 = vmatpush.msra.mxu0 0.0
    %1308 = vmatpush.msra.mxu0 0.0
    %1309 = vmatpush.msra.mxu0 0.0
    %1310 = vmatpush.msra.mxu0 0.0
    %1311 = vmatpush.msra.mxu0 0.0
    %1312 = vmatpush.msra.mxu0 %v128
    %1313 = vmatpush.msra.mxu0 %v127
    %1314 = vmatpush.msra.mxu0 %v126
    %1315 = vmatpush.msra.mxu0 %v125
    %1316 = vmatmul.f32.gmra.mxu0 %v1298
    %v1317 = vpop.f32.mrf.mxu0
    %v1318 = vadd.f32 %v232, %v1317
    %1319 = vdwg.mxu0
    %v1320 = vadd.f32 %v1292, %v1318
    %v1321 = vxor.u32 %v1320, 2147483648
    %v1322 = vmul.f32 %v1321, 1.442695
    %v1323 = vpow.pop %v1322
    %v1324 = vadd.f32 %v1323, 1.0
    %v1325 = vrcp.pop %v1324
    %v1326 = vmul.f32 %v1324, %v1325
    %v1327 = vsub.f32 1.0, %v1326
    %v1328 = vmul.f32 %v1325, %v1327
    %v1329 = vadd.f32 %v1325, %v1328
    %vm1330 = vweird.f32 %v1324
    %vm1331 = vweird.f32 %v1325
    %vm1332 = vmor %vm1330, %vm1331
    %v1333 = vsel %vm1332, %v1325, %v1329
    %v1334 = vand.u32 2147483647, %v1324
    %vm1335 = vcmp.eq.f32.partialorder %v1334, 8.507059e+37
    %v1336 = vand.u32 %v1324, 2147483648
    %v1337 = vor.u32 1.1754944e-38, %v1336
    %v1338 = vsel %vm1335, %v1337, %v1333
    %v1339 = vmul.f32 1.0, %v1338
    %1341 = vrot.lane.b32.xlu0 %v1318, 64
    %v1342 = vpop.permute.xlu0 %1341
    %v1344 = vmul.f32 %v1339, %v1342
    %1346 = vrot.lane.b32.xlu0 %v1344, 64
    %v1347 = vpop.permute.xlu0 %1346
    %v1349 = vadd.f32 %v1292, %v1347
    %v1350 = vtanh.pop %v1349
    %v1351 = vsub.f32 1.0, %v1339
    %1353 = vrot.lane.b32.xlu0 %v1350, 96
    %v1354 = vpop.permute.xlu0 %1353
    %v1356 = vmul.f32 %v1351, %v1354
    %v1357 = vmul.f32 %v1339, %v1196
    %v1358 = vadd.f32 %v1356, %v1357
    %1360 = vset.pattern.permute.xlu0 0
    %1361 = vperm.xlu0 %1360, %v1294
    %v1362 = vpop.permute.xlu0 %1361
    %v1364 = vmul.f32 %v1362, %v1358
    %v1365 = vsub.f32 1.0, %v1294
    %1367 = vset.pattern.permute.xlu0 0
    %1368 = vperm.xlu0 %1367, %v1365
    %v1369 = vpop.permute.xlu0 %1368
    %v1371 = vmul.f32 %v1369, %v1196
    %v1372 = vadd.f32 %v1364, %v1371
    %1374 = vrot.lane.b32.xlu0 %v1364, 96
    %v1375 = vpop.permute.xlu0 %1374
    %s1377 = scalar_lea.vmem [#allocation10], 8
    %1378 = vst.msk [vmem:[%s1377] sm:$0xff] %vm138, %v1375
    %s1379 = scalar_lea.vmem %s0, 56
    %v1380 = vld [vmem:[%s1379] sm:$0xff]
    %s1381 = scalar_lea.vmem %s2, 56
    %v1382 = vld [vmem:[%s1381] sm:$0xff]
    %1384 = vrot.lane.b32.xlu0 %v1284, 96
    %v1385 = vpop.permute.xlu0 %1384
    %v1386 = vsel %vm138, %v1385, 0
    %1388 = vmatpush.msra.mxu0 0.0
    %1389 = vmatpush.msra.mxu0 0.0
    %1390 = vmatpush.msra.mxu0 0.0
    %1391 = vmatpush.msra.mxu0 0.0
    %1392 = vmatpush.msra.mxu0 0.0
    %1393 = vmatpush.msra.mxu0 0.0
    %1394 = vmatpush.msra.mxu0 0.0
    %1395 = vmatpush.msra.mxu0 0.0
    %1396 = vmatpush.msra.mxu0 0.0
    %1397 = vmatpush.msra.mxu0 0.0
    %1398 = vmatpush.msra.mxu0 0.0
    %1399 = vmatpush.msra.mxu0 0.0
    %1400 = vmatpush.msra.mxu0 %v124
    %1401 = vmatpush.msra.mxu0 %v123
    %1402 = vmatpush.msra.mxu0 %v122
    %1403 = vmatpush.msra.mxu0 %v121
    %1404 = vmatmul.f32.gmra.mxu0 %v1386
    %v1405 = vpop.f32.mrf.mxu0
    %v1406 = vadd.f32 %v136, %v1405
    %1407 = vdwg.mxu0
    %v1408 = vadd.f32 %v1380, %v1406
    %v1409 = vxor.u32 %v1408, 2147483648
    %v1410 = vmul.f32 %v1409, 1.442695
    %v1411 = vpow.pop %v1410
    %v1412 = vadd.f32 %v1411, 1.0
    %v1413 = vrcp.pop %v1412
    %v1414 = vmul.f32 %v1412, %v1413
    %v1415 = vsub.f32 1.0, %v1414
    %v1416 = vmul.f32 %v1413, %v1415
    %v1417 = vadd.f32 %v1413, %v1416
    %vm1418 = vweird.f32 %v1412
    %vm1419 = vweird.f32 %v1413
    %vm1420 = vmor %vm1418, %vm1419
    %v1421 = vsel %vm1420, %v1413, %v1417
    %v1422 = vand.u32 2147483647, %v1412
    %vm1423 = vcmp.eq.f32.partialorder %v1422, 8.507059e+37
    %v1424 = vand.u32 %v1412, 2147483648
    %v1425 = vor.u32 1.1754944e-38, %v1424
    %v1426 = vsel %vm1423, %v1425, %v1421
    %v1427 = vmul.f32 1.0, %v1426
    %1429 = vrot.lane.b32.xlu0 %v1406, 64
    %v1430 = vpop.permute.xlu0 %1429
    %v1432 = vmul.f32 %v1427, %v1430
    %1434 = vrot.lane.b32.xlu0 %v1432, 64
    %v1435 = vpop.permute.xlu0 %1434
    %v1437 = vadd.f32 %v1380, %v1435
    %v1438 = vtanh.pop %v1437
    %v1439 = vsub.f32 1.0, %v1427
    %1441 = vrot.lane.b32.xlu0 %v1438, 96
    %v1442 = vpop.permute.xlu0 %1441
    %v1444 = vmul.f32 %v1439, %v1442
    %v1445 = vmul.f32 %v1427, %v1284
    %v1446 = vadd.f32 %v1444, %v1445
    %1448 = vset.pattern.permute.xlu0 0
    %1449 = vperm.xlu0 %1448, %v1382
    %v1450 = vpop.permute.xlu0 %1449
    %v1452 = vmul.f32 %v1450, %v1446
    %v1453 = vsub.f32 1.0, %v1382
    %1455 = vset.pattern.permute.xlu0 0
    %1456 = vperm.xlu0 %1455, %v1453
    %v1457 = vpop.permute.xlu0 %1456
    %v1459 = vmul.f32 %v1457, %v1284
    %v1460 = vadd.f32 %v1452, %v1459
    %1462 = vrot.lane.b32.xlu0 %v1452, 96
    %v1463 = vpop.permute.xlu0 %1462
    %s1465 = scalar_lea.vmem [#allocation9], 56
    %1466 = vst.msk [vmem:[%s1465] sm:$0xff] %vm138, %v1463
    %v1467 = vld [vmem:[%s101] sm:$0xff]
    %v1468 = vld [vmem:[%s109] sm:$0xff]
    %1470 = vrot.lane.b32.xlu0 %v1372, 96
    %v1471 = vpop.permute.xlu0 %1470
    %v1472 = vsel %vm138, %v1471, 0
    %1474 = vmatpush.msra.mxu0 0.0
    %1475 = vmatpush.msra.mxu0 0.0
    %1476 = vmatpush.msra.mxu0 0.0
    %1477 = vmatpush.msra.mxu0 0.0
    %1478 = vmatpush.msra.mxu0 0.0
    %1479 = vmatpush.msra.mxu0 0.0
    %1480 = vmatpush.msra.mxu0 0.0
    %1481 = vmatpush.msra.mxu0 0.0
    %1482 = vmatpush.msra.mxu0 0.0
    %1483 = vmatpush.msra.mxu0 0.0
    %1484 = vmatpush.msra.mxu0 0.0
    %1485 = vmatpush.msra.mxu0 0.0
    %1486 = vmatpush.msra.mxu0 %v128
    %1487 = vmatpush.msra.mxu0 %v127
    %1488 = vmatpush.msra.mxu0 %v126
    %1489 = vmatpush.msra.mxu0 %v125
    %1490 = vmatmul.f32.gmra.mxu0 %v1472
    %v1491 = vpop.f32.mrf.mxu0
    %v1492 = vadd.f32 %v232, %v1491
    %1493 = vdwg.mxu0
    %v1494 = vadd.f32 %v1467, %v1492
    %v1495 = vxor.u32 %v1494, 2147483648
    %v1496 = vmul.f32 %v1495, 1.442695
    %v1497 = vpow.pop %v1496
    %v1498 = vadd.f32 %v1497, 1.0
    %v1499 = vrcp.pop %v1498
    %v1500 = vmul.f32 %v1498, %v1499
    %v1501 = vsub.f32 1.0, %v1500
    %v1502 = vmul.f32 %v1499, %v1501
    %v1503 = vadd.f32 %v1499, %v1502
    %vm1504 = vweird.f32 %v1498
    %vm1505 = vweird.f32 %v1499
    %vm1506 = vmor %vm1504, %vm1505
    %v1507 = vsel %vm1506, %v1499, %v1503
    %v1508 = vand.u32 2147483647, %v1498
    %vm1509 = vcmp.eq.f32.partialorder %v1508, 8.507059e+37
    %v1510 = vand.u32 %v1498, 2147483648
    %v1511 = vor.u32 1.1754944e-38, %v1510
    %v1512 = vsel %vm1509, %v1511, %v1507
    %v1513 = vmul.f32 1.0, %v1512
    %1515 = vrot.lane.b32.xlu0 %v1492, 64
    %v1516 = vpop.permute.xlu0 %1515
    %v1518 = vmul.f32 %v1513, %v1516
    %1520 = vrot.lane.b32.xlu0 %v1518, 64
    %v1521 = vpop.permute.xlu0 %1520
    %v1523 = vadd.f32 %v1467, %v1521
    %v1524 = vtanh.pop %v1523
    %v1525 = vsub.f32 1.0, %v1513
    %1527 = vrot.lane.b32.xlu0 %v1524, 96
    %v1528 = vpop.permute.xlu0 %1527
    %v1530 = vmul.f32 %v1525, %v1528
    %v1531 = vmul.f32 %v1513, %v1372
    %v1532 = vadd.f32 %v1530, %v1531
    %1534 = vset.pattern.permute.xlu0 0
    %1535 = vperm.xlu0 %1534, %v1468
    %v1536 = vpop.permute.xlu0 %1535
    %v1538 = vmul.f32 %v1536, %v1532
    %v1539 = vsub.f32 1.0, %v1468
    %1541 = vset.pattern.permute.xlu0 0
    %1542 = vperm.xlu0 %1541, %v1539
    %v1543 = vpop.permute.xlu0 %1542
    %v1545 = vmul.f32 %v1543, %v1372
    %v1546 = vadd.f32 %v1538, %v1545
    %1548 = vrot.lane.b32.xlu0 %v1538, 96
    %v1549 = vpop.permute.xlu0 %1548
    %1551 = vst.msk [vmem:[#allocation10] sm:$0xff] %vm138, %v1549
    %1553 = vrot.lane.b32.xlu0 %v1460, 96
    %v1554 = vpop.permute.xlu0 %1553
    %1556 = vst.msk [vmem:[#allocation2] sm:$0xff] %vm138, %v1554
    %1558 = vrot.lane.b32.xlu0 %v1546, 96
    %v1559 = vpop.permute.xlu0 %1558
    %1561 = vst.msk [vmem:[#allocation3] sm:$0xff] %vm138, %v1559
    // Predicated region
    $region46: #{tpu_custom_call.1} parent=1 // pred_check
      %p1562 = pneg %p114
    $region47: #{tpu_custom_call.1} parent=1 // pred_check_branch
      %1564 = sbr.rel (%p1562) target = $region49
    $region48: #{tpu_custom_call.1} parent=1 // pred_region
      %1565 = vst.msk [vmem:[#allocation12] sm:$0xff] %vm138, %v1554
      %1566 = vst.msk [vmem:[#allocation13] sm:$0xff] %vm138, %v1559
    $region49: #{tpu_custom_call.1} parent=1 // pred_fallthru
      _
    // Predicated region
    $region50: #{tpu_custom_call.1} parent=1 // pred_check
      _
    $region51: #{tpu_custom_call.1} parent=1 // pred_check_branch
      %1568 = sbr.rel (0) target = $region53
    $region52: #{tpu_custom_call.1} parent=1 // pred_region
      %1570 = vsyncadd [#allocation6], 0
      %s1571 = sshll.u32 [#allocation9], 4
      %s1572 = int_to_ptr.vmem [resolvable:$true] %s1571
      %s1573 = sshll.u32 %s8, 4
      %s1574 = int_to_ptr.hbm [resolvable:$true] %s1573
      %1579 = dma.vmem_to_hbm [thread:$0]  %s1572, 1024, %s1574, [#allocation6], 128, 128, 8
    $region53: #{tpu_custom_call.1} parent=1 // pred_fallthru
      _
    // Predicated region
    $region54: #{tpu_custom_call.1} parent=1 // pred_check
      _
    $region55: #{tpu_custom_call.1} parent=1 // pred_check_branch
      %1581 = sbr.rel (0) target = $region57
    $region56: #{tpu_custom_call.1} parent=1 // pred_region
      %s1582 = ssub.s32 0, 0
      %s1583 = smul.u32 8, %s1582
      %1585 = vsyncadd [#allocation11], 0
      %s1586 = smul.addr %s1583, 8
      %s1587 = scalar_lea.hbm %s9, %s1586
      %s1588 = sshll.u32 [#allocation10], 4
      %s1589 = int_to_ptr.vmem [resolvable:$true] %s1588
      %s1590 = sshll.u32 %s1587, 4
      %s1591 = int_to_ptr.hbm [resolvable:$true] %s1590
      %1596 = dma.vmem_to_hbm [thread:$0]  %s1589, 1024, %s1591, [#allocation11], 128, 128, 8
    $region57: #{tpu_custom_call.1} parent=1 // pred_fallthru
      _
    // Predicated region
    $region58: #{tpu_custom_call.1} parent=1 // pred_check
      _
    $region59: #{tpu_custom_call.1} parent=1 // pred_check_branch
      %1598 = sbr.rel (0) target = $region61
    $region60: #{tpu_custom_call.1} parent=1 // pred_region
      %1600 = vsyncadd [#allocation11], 0
      %s1602 = sshll.u32 [#allocation12], 4
      %s1603 = int_to_ptr.vmem [resolvable:$true] %s1602
      %s1604 = sshll.u32 %s10, 4
      %s1605 = int_to_ptr.hbm [resolvable:$true] %s1604
      %1607 = dma.vmem_to_hbm [thread:$0]  %s1603, 128, %s1605, [#allocation11]
    $region61: #{tpu_custom_call.1} parent=1 // pred_fallthru
      _
    // Predicated region
    $region62: #{tpu_custom_call.1} parent=1 // pred_check
      _
    $region63: #{tpu_custom_call.1} parent=1 // pred_check_branch
      %1609 = sbr.rel (0) target = $region65
    $region64: #{tpu_custom_call.1} parent=1 // pred_region
      %1611 = vsyncadd [#allocation14], 0
      %s1613 = sshll.u32 [#allocation13], 4
      %s1614 = int_to_ptr.vmem [resolvable:$true] %s1613
      %s1615 = sshll.u32 %s11, 4
      %s1616 = int_to_ptr.hbm [resolvable:$true] %s1615
      %1618 = dma.vmem_to_hbm [thread:$0]  %s1614, 128, %s1616, [#allocation14]
    $region65: #{tpu_custom_call.1} parent=1 // pred_fallthru
      _
    // Predicated region
    $region66: #{tpu_custom_call.1} parent=1 // pred_check
      _
    $region67: #{tpu_custom_call.1} parent=1 // pred_check_branch
      %1620 = sbr.rel (0) target = $region69
    $region68: #{tpu_custom_call.1} parent=1 // pred_region
      %1622 = dma.done [#allocation6], 1024
    $region69: #{tpu_custom_call.1} parent=1 // pred_fallthru
      _
    // Predicated region
    $region70: #{tpu_custom_call.1} parent=1 // pred_check
      _
    $region71: #{tpu_custom_call.1} parent=1 // pred_check_branch
      %1624 = sbr.rel (0) target = $region73
    $region72: #{tpu_custom_call.1} parent=1 // pred_region
      %1626 = dma.done [#allocation11], 1024
    $region73: #{tpu_custom_call.1} parent=1 // pred_fallthru
      _
    // Predicated region
    $region74: #{tpu_custom_call.1} parent=1 // pred_check
      _
    $region75: #{tpu_custom_call.1} parent=1 // pred_check_branch
      %1628 = sbr.rel (0) target = $region77
    $region76: #{tpu_custom_call.1} parent=1 // pred_region
      %1630 = dma.done [#allocation11], 128
    $region77: #{tpu_custom_call.1} parent=1 // pred_fallthru
      _
    // Predicated region
    $region78: #{tpu_custom_call.1} parent=1 // pred_check
      _
    $region79: #{tpu_custom_call.1} parent=1 // pred_check_branch
      %1632 = sbr.rel (0) target = $region81
    $region80: #{tpu_custom_call.1} parent=1 // pred_region
      %1634 = dma.done [#allocation14], 128
    $region81: #{tpu_custom_call.1} parent=1 // pred_fallthru
      _
    %1635 = vsyncpa [#allocation5], 1
    %1636 = vsyncpa [#allocation8], 1
    %1637 = vsyncpa [#allocation6], 1
    %1638 = vsyncpa [#allocation11], 1
    %1639 = vsyncpa [#allocation14], 1

</llo_original>
